<compile_context>
chip_gen: v6e
topology: v6e:2x2x1
jax: 0.10.0
libtpu: 0.0.40
codegen_flags: <defaults>
</compile_context>

<pallas_src>
import jax
import jax.numpy as jnp
from jax.experimental import pallas as pl
from jax.experimental.pallas import tpu as pltpu

KH = KW = 5                 # both convolutions are 5x5, stride 1, valid padding
C1 = 20                     # conv1 output channels
C2 = 20                     # conv2 output channels
C1P = 24                    # conv1 channels padded to a multiple of 8 (sublanes)
C2P = 24                    # conv2 channels padded to a multiple of 8 (sublanes)
NWIN = KH * KW              # 25 taps per convolution
R = 2 * KH - 1              # 9: fused receptive field of conv2(conv1(.))
RR = R * R                  # 81 rows in the compact base matrix
RR_PAD = 88                 # 81 padded up to a multiple of 8 sublanes


def _fused_kernel(base_ref, w1big_ref, b1_ref, w2_ref, b2_ref, o_ref, p2_ref):
    """relu(conv2(relu(conv1(x)))) as two channel-major MXU matmuls.

    base_ref : (RR_PAD, TP)      compact 9x9-receptive-field input matrix
    w1big_ref: (25*C1P, RR_PAD)  block-Toeplitz conv1 weights (tap-duplicated)
    b1_ref   : (25*C1P, 1)       conv1 bias replicated per conv2 tap
    w2_ref   : (C2P, 25*C1P)     conv2 weights, channel-major im2col layout
    b2_ref   : (C2P, 1)
    o_ref    : (C2P, TP)         channel-major, lane-dense output
    p2_ref   : (25*C1P, TP)      VMEM scratch = relu(conv1) conv2-im2col matrix
    """
    # conv1 + bias + ReLU for all 25 conv2 taps in one fused pass; the result
    # IS the conv2 im2col matrix: written exactly once, read exactly once.
    p2_ref[...] = jnp.maximum(
        jnp.dot(w1big_ref[...], base_ref[...],
                preferred_element_type=jnp.float32) + b1_ref[...], 0.0)
    # conv2 + bias + ReLU, lane-dense unmasked output store.
    o_ref[...] = jnp.maximum(
        jnp.dot(w2_ref[...], p2_ref[...],
                preferred_element_type=jnp.float32) + b2_ref[...], 0.0)


def prepare_params(params):
    """One-time weight repack (call ONCE, outside the jitted forward).

    Returns channel-major, tile-aligned matmul operands:
      w1big: (25*C1P, RR_PAD) block-Toeplitz conv1 weights; row block k=(kh,kw)
             evaluates conv1 at output positions shifted by conv2 tap k.
      b1rep: (25*C1P, 1), w2_cm: (C2P, 25*C1P), b2p: (C2P, 1)
    """
    w1, b1, w2, b2 = params                               # HWIO weights
    # conv1: (KH, KW, 1, C1) -> (C1P, KH, KW), zero rows for padded channels.
    w1_t = jnp.transpose(w1, (3, 0, 1, 2)).reshape(C1, KH, KW)
    w1_t = jnp.pad(w1_t, ((0, C1P - C1), (0, 0), (0, 0)))
    # Block-Toeplitz duplication over the 25 conv2 taps (absorbs the 25x data
    # duplication the old wrapper did on the activations).
    w1big = jnp.zeros((NWIN, C1P, R, R), jnp.float32)
    for kh in range(KH):
        for kw in range(KW):
            k = kh * KW + kw
            w1big = w1big.at[k, :, kh:kh + KH, kw:kw + KW].set(w1_t)
    w1big = w1big.reshape(NWIN * C1P, RR)
    w1big = jnp.pad(w1big, ((0, 0), (0, RR_PAD - RR)))
    b1rep = jnp.tile(jnp.pad(b1, (0, C1P - C1)), NWIN).reshape(NWIN * C1P, 1)
    # conv2: (KH, KW, C1, C2) -> (C2P, 25*C1P), padded channels are zero rows/cols.
    w2_cm = jnp.transpose(w2, (3, 0, 1, 2))               # (C2, KH, KW, C1)
    w2_cm = jnp.pad(w2_cm, ((0, C2P - C2), (0, 0), (0, 0), (0, C1P - C1)))
    w2_cm = w2_cm.reshape(C2P, NWIN * C1P)
    b2p = jnp.pad(b2, (0, C2P - C2)).reshape(C2P, 1)
    return w1big, b1rep, w2_cm, b2p


def _build_base(x_img, p_pad):
    """(N, H, W) -> (RR_PAD, p_pad) compact receptive-field matrix.

    Row oh*R+ow, column p = n*Ho*Wo + y*Wo + x holds x[n, y+oh, x+ow]
    (pure layout plumbing of the raw input, ~8x smaller than the old p1_big).
    """
    N, H, W = x_img.shape
    Ho = H - 2 * (KH - 1)
    Wo = W - 2 * (KW - 1)
    P = N * Ho * Wo
    rows = [x_img[:, oh:oh + Ho, ow:ow + Wo].reshape(1, P)
            for oh in range(R) for ow in range(R)]
    base = jnp.concatenate(rows, axis=0)                  # (81, P)
    return jnp.pad(base, ((0, RR_PAD - RR), (0, p_pad - P)))


def _pick_tile(p_pad):
    """Tile width over the position (lane) axis; p_pad is a multiple of 128."""
    if p_pad <= 1024:
        return p_pad                                      # single grid step
    for t in (1024, 512, 256, 128):
        if p_pad % t == 0:
            return t
    return 128


def _fused_conv_conv(base, w1big, b1rep, w2_cm, b2p):
    p_pad = base.shape[1]
    tp = _pick_tile(p_pad)
    grid = (p_pad // tp,)
    return pl.pallas_call(
        _fused_kernel,
        out_shape=jax.ShapeDtypeStruct((C2P, p_pad), jnp.float32),
        grid_spec=pltpu.PrefetchScalarGridSpec(
            num_scalar_prefetch=0,
            grid=grid,
            in_specs=[
                pl.BlockSpec((RR_PAD, tp), lambda i: (0, i)),   # base (tiled on P)
                pl.BlockSpec(w1big.shape, lambda i: (0, 0)),    # weights: resident
                pl.BlockSpec(b1rep.shape, lambda i: (0, 0)),
                pl.BlockSpec(w2_cm.shape, lambda i: (0, 0)),
                pl.BlockSpec(b2p.shape, lambda i: (0, 0)),
            ],
            out_specs=pl.BlockSpec((C2P, tp), lambda i: (0, i)),
            scratch_shapes=[pltpu.VMEM((NWIN * C1P, tp), jnp.float32)],
        ),
        compiler_params=pltpu.CompilerParams(
            dimension_semantics=("parallel",),
            vmem_limit_bytes=32 * 1024 * 1024),
    )(base, w1big, b1rep, w2_cm, b2p)


def model_forward(x_nchw, prepped_params):
    """Equivalent of Model.forward. x: (N, 1, H, W) f32 -> (N, 20, H-8, W-8)."""
    w1big, b1rep, w2_cm, b2p = prepped_params
    N, _, H, W = x_nchw.shape
    Ho = H - 2 * (KH - 1)
    Wo = W - 2 * (KW - 1)
    P = N * Ho * Wo
    p_pad = -(-P // 128) * 128                     # lane-density guard
    base = _build_base(x_nchw[:, 0], p_pad)
    out = _fused_conv_conv(base, w1big, b1rep, w2_cm, b2p)   # (C2P, p_pad)
    out = out[:C2, :P]
    return jnp.transpose(out.reshape(C2, N, Ho, Wo), (1, 0, 2, 3))


def init_params(key):
    k1, k2, k3, k4 = jax.random.split(key, 4)
    # Conv1: Cin=1, Cout=20, 5x5 in HWIO layout (KH, KW, Cin, Cout)
    fan1 = 1 * 5 * 5
    w1 = jax.random.uniform(k1, (5, 5, 1, 20), jnp.float32,
                            -1.0 / jnp.sqrt(fan1), 1.0 / jnp.sqrt(fan1))
    b1 = jax.random.uniform(k2, (20,), jnp.float32,
                            -1.0 / jnp.sqrt(fan1), 1.0 / jnp.sqrt(fan1))
    # Conv2: Cin=20, Cout=20, 5x5
    fan2 = 20 * 5 * 5
    w2 = jax.random.uniform(k3, (5, 5, 20, 20), jnp.float32,
                            -1.0 / jnp.sqrt(fan2), 1.0 / jnp.sqrt(fan2))
    b2 = jax.random.uniform(k4, (20,), jnp.float32,
                            -1.0 / jnp.sqrt(fan2), 1.0 / jnp.sqrt(fan2))
    return (w1, b1, w2, b2)


if __name__ == "__main__":
    key = jax.random.PRNGKey(0)
    kx, kp = jax.random.split(key)

    # Small shapes consistent with the module: N=2, Cin=1, H=W=16.
    x = jax.random.normal(kx, (2, 1, 16, 16), jnp.float32)
    params = init_params(kp)

    # Weight repacking hoisted out of the per-call jitted path (done once).
    prepped = jax.block_until_ready(prepare_params(params))

    fwd = jax.jit(model_forward)
    y = jax.block_until_ready(fwd(x, prepped))

    # conv1(5x5, valid): 16 -> 12 ; conv2(5x5, valid): 12 -> 8
    assert y.shape == (2, 20, 8, 8), y.shape
    assert bool(jnp.all(y >= 0.0))   # ReLU output is non-negative

    # Cross-check against a pure-JAX reference (lax conv in NCHW).
    w1, b1, w2, b2 = params

    def ref_conv(x_nchw, w_hwio, b):
        w_oihw = jnp.transpose(w_hwio, (3, 2, 0, 1))
        out = jax.lax.conv_general_dilated(
            x_nchw, w_oihw, (1, 1), "VALID",
            dimension_numbers=("NCHW", "OIHW", "NCHW"),
            precision=jax.lax.Precision.HIGHEST)
        return jax.nn.relu(out + b[None, :, None, None])

    y_ref = ref_conv(ref_conv(x, w1, b1), w2, b2)
    assert jnp.allclose(y, y_ref, atol=1e-4, rtol=1e-4), \
        float(jnp.max(jnp.abs(y - y_ref)))

    print("KERNEL_OK")
</pallas_src>

<mosaic_0001>
module attributes {stable_mosaic.version = 11 : i64} {
  func.func @_fused_kernel(%arg0: i32, %arg1: memref<88x128xf32, #tpu.memory_space<vmem>>, %arg2: memref<600x88xf32, #tpu.memory_space<vmem>>, %arg3: memref<600x1xf32, #tpu.memory_space<vmem>>, %arg4: memref<24x600xf32, #tpu.memory_space<vmem>>, %arg5: memref<24x1xf32, #tpu.memory_space<vmem>>, %arg6: memref<24x128xf32, #tpu.memory_space<vmem>>, %arg7: memref<600x128xf32, #tpu.memory_space<vmem>>) attributes {dimension_semantics = [#tpu.dimension_semantics<parallel>], iteration_bounds = array<i64: 1>, scalar_prefetch = 0 : i64, scratch_operands = 1 : i64, tpu.core_type = #tpu.core_type<tc>, window_params = [{transform_indices = @transform_0, window_bounds = array<i64: 88, 128>}, {pipeline_mode = #tpu.pipeline_mode<synchronous>, transform_indices = @transform_1, window_bounds = array<i64: 600, 88>}, {pipeline_mode = #tpu.pipeline_mode<synchronous>, transform_indices = @transform_2, window_bounds = array<i64: 600, 1>}, {pipeline_mode = #tpu.pipeline_mode<synchronous>, transform_indices = @transform_3, window_bounds = array<i64: 24, 600>}, {pipeline_mode = #tpu.pipeline_mode<synchronous>, transform_indices = @transform_4, window_bounds = array<i64: 24, 1>}, {transform_indices = @transform_5, window_bounds = array<i64: 24, 128>}]} {
    %c0 = arith.constant 0 : index
    %c0_0 = arith.constant 0 : index
    %0 = vector.load %arg2[%c0, %c0_0] : memref<600x88xf32, #tpu.memory_space<vmem>>, vector<600x88xf32>
    %c0_1 = arith.constant 0 : index
    %c0_2 = arith.constant 0 : index
    %1 = vector.load %arg1[%c0_1, %c0_2] : memref<88x128xf32, #tpu.memory_space<vmem>>, vector<88x128xf32>
    %cst = arith.constant dense<0.000000e+00> : vector<600x128xf32>
    %2 = tpu.matmul %0, %1, %cst {dimension_numbers = #tpu.dot_dimension_numbers<[1], [0], [0], [1], [0, 0, 1, 1], [], []>} : vector<600x88xf32>, vector<88x128xf32>, vector<600x128xf32> -> vector<600x128xf32>
    %c0_3 = arith.constant 0 : index
    %c0_4 = arith.constant 0 : index
    %3 = vector.load %arg3[%c0_3, %c0_4] : memref<600x1xf32, #tpu.memory_space<vmem>>, vector<600x1xf32>
    %4 = vector.broadcast %3 : vector<600x1xf32> to vector<600x128xf32>
    %5 = arith.addf %2, %4 : vector<600x128xf32>
    %cst_5 = arith.constant 0.000000e+00 : f32
    %6 = vector.broadcast %cst_5 : f32 to vector<600x128xf32>
    %7 = arith.maximumf %5, %6 : vector<600x128xf32>
    %c0_6 = arith.constant 0 : index
    %c0_7 = arith.constant 0 : index
    %8 = vector.load %arg7[%c0_6, %c0_7] : memref<600x128xf32, #tpu.memory_space<vmem>>, vector<600x128xf32>
    tpu.vector_store %arg7[%c0_6, %c0_7], %7 {strides = array<i32>} : memref<600x128xf32, #tpu.memory_space<vmem>>, vector<600x128xf32>,
    %c0_8 = arith.constant 0 : index
    %c0_9 = arith.constant 0 : index
    %9 = vector.load %arg4[%c0_8, %c0_9] : memref<24x600xf32, #tpu.memory_space<vmem>>, vector<24x600xf32>
    %c0_10 = arith.constant 0 : index
    %c0_11 = arith.constant 0 : index
    %10 = vector.load %arg7[%c0_10, %c0_11] : memref<600x128xf32, #tpu.memory_space<vmem>>, vector<600x128xf32>
    %cst_12 = arith.constant dense<0.000000e+00> : vector<24x128xf32>
    %11 = tpu.matmul %9, %10, %cst_12 {dimension_numbers = #tpu.dot_dimension_numbers<[1], [0], [0], [1], [0, 0, 1, 1], [], []>} : vector<24x600xf32>, vector<600x128xf32>, vector<24x128xf32> -> vector<24x128xf32>
    %c0_13 = arith.constant 0 : index
    %c0_14 = arith.constant 0 : index
    %12 = vector.load %arg5[%c0_13, %c0_14] : memref<24x1xf32, #tpu.memory_space<vmem>>, vector<24x1xf32>
    %13 = vector.broadcast %12 : vector<24x1xf32> to vector<24x128xf32>
    %14 = arith.addf %11, %13 : vector<24x128xf32>
    %cst_15 = arith.constant 0.000000e+00 : f32
    %15 = vector.broadcast %cst_15 : f32 to vector<24x128xf32>
    %16 = arith.maximumf %14, %15 : vector<24x128xf32>
    %c0_16 = arith.constant 0 : index
    %c0_17 = arith.constant 0 : index
    %17 = vector.load %arg6[%c0_16, %c0_17] : memref<24x128xf32, #tpu.memory_space<vmem>>, vector<24x128xf32>
    tpu.vector_store %arg6[%c0_16, %c0_17], %16 {strides = array<i32>} : memref<24x128xf32, #tpu.memory_space<vmem>>, vector<24x128xf32>,
    return
  }
  func.func @transform_0(%arg0: i32) -> (i32, i32) {
    %c0_i32 = arith.constant 0 : i32
    %c0_i32_0 = arith.constant 0 : i32
    return %c0_i32, %arg0 : i32, i32
  }
  func.func @transform_1(%arg0: i32) -> (i32, i32) {
    %c0_i32 = arith.constant 0 : i32
    %c0_i32_0 = arith.constant 0 : i32
    %c0_i32_1 = arith.constant 0 : i32
    return %c0_i32, %c0_i32_0 : i32, i32
  }
  func.func @transform_2(%arg0: i32) -> (i32, i32) {
    %c0_i32 = arith.constant 0 : i32
    %c0_i32_0 = arith.constant 0 : i32
    %c0_i32_1 = arith.constant 0 : i32
    return %c0_i32, %c0_i32_0 : i32, i32
  }
  func.func @transform_3(%arg0: i32) -> (i32, i32) {
    %c0_i32 = arith.constant 0 : i32
    %c0_i32_0 = arith.constant 0 : i32
    %c0_i32_1 = arith.constant 0 : i32
    return %c0_i32, %c0_i32_0 : i32, i32
  }
  func.func @transform_4(%arg0: i32) -> (i32, i32) {
    %c0_i32 = arith.constant 0 : i32
    %c0_i32_0 = arith.constant 0 : i32
    %c0_i32_1 = arith.constant 0 : i32
    return %c0_i32, %c0_i32_0 : i32, i32
  }
  func.func @transform_5(%arg0: i32) -> (i32, i32) {
    %c0_i32 = arith.constant 0 : i32
    %c0_i32_0 = arith.constant 0 : i32
    return %c0_i32, %arg0 : i32, i32
  }
}

</mosaic_0001>

<llo_original>
// kernel: model_forward.1
$region0: #{model_forward.1}
  #allocation0 [shape = 'u32[]', space=smem, size = 0x4, offset = 0x4, fixed_abs, tag = 'smem constant byte address 0x4 - core index']
  #allocation1 [shape = 'u32[144,128]{1,0:T(1,128)}', space=vmem, size = 0x12000, scoped, tag = 'internal scratch']
  #allocation2 [shape = 'f32[600,128]{1,0:T(8,128)}', space=vmem, size = 0x4b000, scoped, tag = 'scratch operand']
  %s0 = inlined_call_operand.vmem [shape: f32[88,128], index: 0, kind: input, shape index: {}]
  %s1 = inlined_call_operand.vmem [shape: f32[600,88], index: 1, kind: input, shape index: {}]
  %s2 = inlined_call_operand.vmem [shape: f32[600,1], index: 2, kind: input, shape index: {}]
  %s3 = inlined_call_operand.vmem [shape: f32[24,600], index: 3, kind: input, shape index: {}]
  %s4 = inlined_call_operand.vmem [shape: f32[24,1], index: 4, kind: input, shape index: {}]
  %s5 = inlined_call_operand.vmem [shape: f32[24,128], index: 5, kind: output, shape index: {}]
  %s6 = sld [smem:[#allocation0]]
  $region30: #{model_forward.1} parent=0
    _
  %s8 = ssub.s32 1, %s6
  %s9 = scalar_select 0, %s8, %s6
  // Predicated region
  $region2: #{model_forward.1} parent=0 // pred_check
    _
  $region3: #{model_forward.1} parent=0 // pred_check_branch
    %11 = sbr.rel (0) target = $region5
  $region4: #{model_forward.1} parent=0 // pred_region
    _
  $region5: #{model_forward.1} parent=0 // pred_fallthru
    _
  // Predicated region
  $region6: #{model_forward.1} parent=0 // pred_check
    _
  $region7: #{model_forward.1} parent=0 // pred_check_branch
    %13 = sbr.rel (0) target = $region9
  $region8: #{model_forward.1} parent=0 // pred_region
    _
  $region9: #{model_forward.1} parent=0 // pred_fallthru
    _
  // Predicated region
  $region10: #{model_forward.1} parent=0 // pred_check
    _
  $region11: #{model_forward.1} parent=0 // pred_check_branch
    %15 = sbr.rel (0) target = $region13
  $region12: #{model_forward.1} parent=0 // pred_region
    _
  $region13: #{model_forward.1} parent=0 // pred_fallthru
    _
  // Predicated region
  $region14: #{model_forward.1} parent=0 // pred_check
    _
  $region15: #{model_forward.1} parent=0 // pred_check_branch
    %17 = sbr.rel (0) target = $region17
  $region16: #{model_forward.1} parent=0 // pred_region
    _
  $region17: #{model_forward.1} parent=0 // pred_fallthru
    _
  // Predicated region
  $region18: #{model_forward.1} parent=0 // pred_check
    _
  $region19: #{model_forward.1} parent=0 // pred_check_branch
    %19 = sbr.rel (0) target = $region21
  $region20: #{model_forward.1} parent=0 // pred_region
    _
  $region21: #{model_forward.1} parent=0 // pred_fallthru
    _
  %v20 = vld [vmem:[%s1] sm:$0xff]
  %v21 = vld [vmem:[%s1 + $0x8] sm:$0xff]
  %v22 = vld [vmem:[%s1 + $0x10] sm:$0xff]
  %v23 = vld [vmem:[%s1 + $0x18] sm:$0xff]
  %v24 = vld [vmem:[%s1 + $0x20] sm:$0xff]
  %v25 = vld [vmem:[%s1 + $0x28] sm:$0xff]
  %v26 = vld [vmem:[%s1 + $0x30] sm:$0xff]
  %v27 = vld [vmem:[%s1 + $0x38] sm:$0xff]
  %v28 = vld [vmem:[%s1 + $0x40] sm:$0xff]
  %v29 = vld [vmem:[%s1 + $0x48] sm:$0xff]
  %v30 = vld [vmem:[%s1 + $0x50] sm:$0xff]
  %v31 = vld [vmem:[%s1 + $0x58] sm:$0xff]
  %v32 = vld [vmem:[%s1 + $0x60] sm:$0xff]
  %v33 = vld [vmem:[%s1 + $0x68] sm:$0xff]
  %v34 = vld [vmem:[%s1 + $0x70] sm:$0xff]
  %v35 = vld [vmem:[%s1 + $0x78] sm:$0xff]
  %v36 = vld [vmem:[%s1 + $0x80] sm:$0xff]
  %v37 = vld [vmem:[%s1 + $0x88] sm:$0xff]
  %v38 = vld [vmem:[%s1 + $0x90] sm:$0xff]
  %v39 = vld [vmem:[%s1 + $0x98] sm:$0xff]
  %v40 = vld [vmem:[%s1 + $0xa0] sm:$0xff]
  %v41 = vld [vmem:[%s1 + $0xa8] sm:$0xff]
  %v42 = vld [vmem:[%s1 + $0xb0] sm:$0xff]
  %v43 = vld [vmem:[%s1 + $0xb8] sm:$0xff]
  %v44 = vld [vmem:[%s1 + $0xc0] sm:$0xff]
  %v45 = vld [vmem:[%s1 + $0xc8] sm:$0xff]
  %v46 = vld [vmem:[%s1 + $0xd0] sm:$0xff]
  %v47 = vld [vmem:[%s1 + $0xd8] sm:$0xff]
  %v48 = vld [vmem:[%s1 + $0xe0] sm:$0xff]
  %v49 = vld [vmem:[%s1 + $0xe8] sm:$0xff]
  %v50 = vld [vmem:[%s1 + $0xf0] sm:$0xff]
  %v51 = vld [vmem:[%s1 + $0xf8] sm:$0xff]
  %v52 = vld [vmem:[%s1 + $0x100] sm:$0xff]
  %v53 = vld [vmem:[%s1 + $0x108] sm:$0xff]
  %v54 = vld [vmem:[%s1 + $0x110] sm:$0xff]
  %v55 = vld [vmem:[%s1 + $0x118] sm:$0xff]
  %v56 = vld [vmem:[%s1 + $0x120] sm:$0xff]
  %v57 = vld [vmem:[%s1 + $0x128] sm:$0xff]
  %v58 = vld [vmem:[%s1 + $0x130] sm:$0xff]
  %v59 = vld [vmem:[%s1 + $0x138] sm:$0xff]
  %v60 = vld [vmem:[%s1 + $0x140] sm:$0xff]
  %v61 = vld [vmem:[%s1 + $0x148] sm:$0xff]
  %v62 = vld [vmem:[%s1 + $0x150] sm:$0xff]
  %v63 = vld [vmem:[%s1 + $0x158] sm:$0xff]
  %v64 = vld [vmem:[%s1 + $0x160] sm:$0xff]
  %v65 = vld [vmem:[%s1 + $0x168] sm:$0xff]
  %v66 = vld [vmem:[%s1 + $0x170] sm:$0xff]
  %v67 = vld [vmem:[%s1 + $0x178] sm:$0xff]
  %v68 = vld [vmem:[%s1 + $0x180] sm:$0xff]
  %v69 = vld [vmem:[%s1 + $0x188] sm:$0xff]
  %v70 = vld [vmem:[%s1 + $0x190] sm:$0xff]
  %v71 = vld [vmem:[%s1 + $0x198] sm:$0xff]
  %v72 = vld [vmem:[%s1 + $0x1a0] sm:$0xff]
  %v73 = vld [vmem:[%s1 + $0x1a8] sm:$0xff]
  %v74 = vld [vmem:[%s1 + $0x1b0] sm:$0xff]
  %v75 = vld [vmem:[%s1 + $0x1b8] sm:$0xff]
  %v76 = vld [vmem:[%s1 + $0x1c0] sm:$0xff]
  %v77 = vld [vmem:[%s1 + $0x1c8] sm:$0xff]
  %v78 = vld [vmem:[%s1 + $0x1d0] sm:$0xff]
  %v79 = vld [vmem:[%s1 + $0x1d8] sm:$0xff]
  %v80 = vld [vmem:[%s1 + $0x1e0] sm:$0xff]
  %v81 = vld [vmem:[%s1 + $0x1e8] sm:$0xff]
  %v82 = vld [vmem:[%s1 + $0x1f0] sm:$0xff]
  %v83 = vld [vmem:[%s1 + $0x1f8] sm:$0xff]
  %v84 = vld [vmem:[%s1 + $0x200] sm:$0xff]
  %v85 = vld [vmem:[%s1 + $0x208] sm:$0xff]
  %v86 = vld [vmem:[%s1 + $0x210] sm:$0xff]
  %v87 = vld [vmem:[%s1 + $0x218] sm:$0xff]
  %v88 = vld [vmem:[%s1 + $0x220] sm:$0xff]
  %v89 = vld [vmem:[%s1 + $0x228] sm:$0xff]
  %v90 = vld [vmem:[%s1 + $0x230] sm:$0xff]
  %v91 = vld [vmem:[%s1 + $0x238] sm:$0xff]
  %v92 = vld [vmem:[%s1 + $0x240] sm:$0xff]
  %v93 = vld [vmem:[%s1 + $0x248] sm:$0xff]
  %v94 = vld [vmem:[%s1 + $0x250] sm:$0xff]
  %v95 = vld [vmem:[%s0] sm:$0xff]
  %v96 = vld [vmem:[%s0 + $0x8] sm:$0xff]
  %v97 = vld [vmem:[%s0 + $0x10] sm:$0xff]
  %v98 = vld [vmem:[%s0 + $0x18] sm:$0xff]
  %v99 = vld [vmem:[%s0 + $0x20] sm:$0xff]
  %v100 = vld [vmem:[%s0 + $0x28] sm:$0xff]
  %v101 = vld [vmem:[%s0 + $0x30] sm:$0xff]
  %v102 = vld [vmem:[%s0 + $0x38] sm:$0xff]
  %v103 = vld [vmem:[%s0 + $0x40] sm:$0xff]
  %v104 = vld [vmem:[%s0 + $0x48] sm:$0xff]
  %v105 = vld [vmem:[%s0 + $0x50] sm:$0xff]
  %v106 = vld [vmem:[%s2] sm:$0xff]
  %v107 = vld [vmem:[%s2 + $0x8] sm:$0xff]
  %v108 = vld [vmem:[%s2 + $0x10] sm:$0xff]
  %v109 = vld [vmem:[%s2 + $0x18] sm:$0xff]
  %v110 = vld [vmem:[%s2 + $0x20] sm:$0xff]
  %v111 = vld [vmem:[%s2 + $0x28] sm:$0xff]
  %v112 = vld [vmem:[%s2 + $0x30] sm:$0xff]
  %v113 = vld [vmem:[%s2 + $0x38] sm:$0xff]
  %v114 = vld [vmem:[%s2 + $0x40] sm:$0xff]
  %v115 = vld [vmem:[%s2 + $0x48] sm:$0xff]
  %v116 = vld [vmem:[%s2 + $0x50] sm:$0xff]
  %v117 = vld [vmem:[%s2 + $0x58] sm:$0xff]
  %v118 = vld [vmem:[%s2 + $0x60] sm:$0xff]
  %v119 = vld [vmem:[%s2 + $0x68] sm:$0xff]
  %v120 = vld [vmem:[%s2 + $0x70] sm:$0xff]
  %v121 = vld [vmem:[%s2 + $0x78] sm:$0xff]
  %v122 = vld [vmem:[%s2 + $0x80] sm:$0xff]
  %v123 = vld [vmem:[%s2 + $0x88] sm:$0xff]
  %v124 = vld [vmem:[%s2 + $0x90] sm:$0xff]
  %v125 = vld [vmem:[%s2 + $0x98] sm:$0xff]
  %v126 = vld [vmem:[%s2 + $0xa0] sm:$0xff]
  %v127 = vld [vmem:[%s2 + $0xa8] sm:$0xff]
  %v128 = vld [vmem:[%s2 + $0xb0] sm:$0xff]
  %v129 = vld [vmem:[%s2 + $0xb8] sm:$0xff]
  %v130 = vld [vmem:[%s2 + $0xc0] sm:$0xff]
  %v131 = vld [vmem:[%s2 + $0xc8] sm:$0xff]
  %v132 = vld [vmem:[%s2 + $0xd0] sm:$0xff]
  %v133 = vld [vmem:[%s2 + $0xd8] sm:$0xff]
  %v134 = vld [vmem:[%s2 + $0xe0] sm:$0xff]
  %v135 = vld [vmem:[%s2 + $0xe8] sm:$0xff]
  %v136 = vld [vmem:[%s2 + $0xf0] sm:$0xff]
  %v137 = vld [vmem:[%s2 + $0xf8] sm:$0xff]
  %v138 = vld [vmem:[%s2 + $0x100] sm:$0xff]
  %v139 = vld [vmem:[%s2 + $0x108] sm:$0xff]
  %v140 = vld [vmem:[%s2 + $0x110] sm:$0xff]
  %v141 = vld [vmem:[%s2 + $0x118] sm:$0xff]
  %v142 = vld [vmem:[%s2 + $0x120] sm:$0xff]
  %v143 = vld [vmem:[%s2 + $0x128] sm:$0xff]
  %v144 = vld [vmem:[%s2 + $0x130] sm:$0xff]
  %v145 = vld [vmem:[%s2 + $0x138] sm:$0xff]
  %v146 = vld [vmem:[%s2 + $0x140] sm:$0xff]
  %v147 = vld [vmem:[%s2 + $0x148] sm:$0xff]
  %v148 = vld [vmem:[%s2 + $0x150] sm:$0xff]
  %v149 = vld [vmem:[%s2 + $0x158] sm:$0xff]
  %v150 = vld [vmem:[%s2 + $0x160] sm:$0xff]
  %v151 = vld [vmem:[%s2 + $0x168] sm:$0xff]
  %v152 = vld [vmem:[%s2 + $0x170] sm:$0xff]
  %v153 = vld [vmem:[%s2 + $0x178] sm:$0xff]
  %v154 = vld [vmem:[%s2 + $0x180] sm:$0xff]
  %v155 = vld [vmem:[%s2 + $0x188] sm:$0xff]
  %v156 = vld [vmem:[%s2 + $0x190] sm:$0xff]
  %v157 = vld [vmem:[%s2 + $0x198] sm:$0xff]
  %v158 = vld [vmem:[%s2 + $0x1a0] sm:$0xff]
  %v159 = vld [vmem:[%s2 + $0x1a8] sm:$0xff]
  %v160 = vld [vmem:[%s2 + $0x1b0] sm:$0xff]
  %v161 = vld [vmem:[%s2 + $0x1b8] sm:$0xff]
  %v162 = vld [vmem:[%s2 + $0x1c0] sm:$0xff]
  %v163 = vld [vmem:[%s2 + $0x1c8] sm:$0xff]
  %v164 = vld [vmem:[%s2 + $0x1d0] sm:$0xff]
  %v165 = vld [vmem:[%s2 + $0x1d8] sm:$0xff]
  %v166 = vld [vmem:[%s2 + $0x1e0] sm:$0xff]
  %v167 = vld [vmem:[%s2 + $0x1e8] sm:$0xff]
  %v168 = vld [vmem:[%s2 + $0x1f0] sm:$0xff]
  %v169 = vld [vmem:[%s2 + $0x1f8] sm:$0xff]
  %v170 = vld [vmem:[%s2 + $0x200] sm:$0xff]
  %v171 = vld [vmem:[%s2 + $0x208] sm:$0xff]
  %v172 = vld [vmem:[%s2 + $0x210] sm:$0xff]
  %v173 = vld [vmem:[%s2 + $0x218] sm:$0xff]
  %v174 = vld [vmem:[%s2 + $0x220] sm:$0xff]
  %v175 = vld [vmem:[%s2 + $0x228] sm:$0xff]
  %v176 = vld [vmem:[%s2 + $0x230] sm:$0xff]
  %v177 = vld [vmem:[%s2 + $0x238] sm:$0xff]
  %v178 = vld [vmem:[%s2 + $0x240] sm:$0xff]
  %v179 = vld [vmem:[%s2 + $0x248] sm:$0xff]
  %v180 = vld [vmem:[%s2 + $0x250] sm:$0xff]
  %182 = vset.pattern.permute.xlu0 0
  %183 = vperm.xlu0 %182, %v106
  %v184 = vpop.permute.xlu0 %183
  %187 = vset.pattern.permute.xlu0 0
  %188 = vperm.xlu0 %187, %v107
  %v189 = vpop.permute.xlu0 %188
  %192 = vset.pattern.permute.xlu0 0
  %193 = vperm.xlu0 %192, %v108
  %v194 = vpop.permute.xlu0 %193
  %197 = vset.pattern.permute.xlu0 0
  %198 = vperm.xlu0 %197, %v109
  %v199 = vpop.permute.xlu0 %198
  %202 = vset.pattern.permute.xlu0 0
  %203 = vperm.xlu0 %202, %v110
  %v204 = vpop.permute.xlu0 %203
  %207 = vset.pattern.permute.xlu0 0
  %208 = vperm.xlu0 %207, %v111
  %v209 = vpop.permute.xlu0 %208
  %212 = vset.pattern.permute.xlu0 0
  %213 = vperm.xlu0 %212, %v112
  %v214 = vpop.permute.xlu0 %213
  %217 = vset.pattern.permute.xlu0 0
  %218 = vperm.xlu0 %217, %v113
  %v219 = vpop.permute.xlu0 %218
  %222 = vset.pattern.permute.xlu0 0
  %223 = vperm.xlu0 %222, %v114
  %v224 = vpop.permute.xlu0 %223
  %227 = vset.pattern.permute.xlu0 0
  %228 = vperm.xlu0 %227, %v115
  %v229 = vpop.permute.xlu0 %228
  %232 = vset.pattern.permute.xlu0 0
  %233 = vperm.xlu0 %232, %v116
  %v234 = vpop.permute.xlu0 %233
  %237 = vset.pattern.permute.xlu0 0
  %238 = vperm.xlu0 %237, %v117
  %v239 = vpop.permute.xlu0 %238
  %242 = vset.pattern.permute.xlu0 0
  %243 = vperm.xlu0 %242, %v118
  %v244 = vpop.permute.xlu0 %243
  %247 = vset.pattern.permute.xlu0 0
  %248 = vperm.xlu0 %247, %v119
  %v249 = vpop.permute.xlu0 %248
  %252 = vset.pattern.permute.xlu0 0
  %253 = vperm.xlu0 %252, %v120
  %v254 = vpop.permute.xlu0 %253
  %257 = vset.pattern.permute.xlu0 0
  %258 = vperm.xlu0 %257, %v121
  %v259 = vpop.permute.xlu0 %258
  %262 = vset.pattern.permute.xlu0 0
  %263 = vperm.xlu0 %262, %v122
  %v264 = vpop.permute.xlu0 %263
  %267 = vset.pattern.permute.xlu0 0
  %268 = vperm.xlu0 %267, %v123
  %v269 = vpop.permute.xlu0 %268
  %272 = vset.pattern.permute.xlu0 0
  %273 = vperm.xlu0 %272, %v124
  %v274 = vpop.permute.xlu0 %273
  %277 = vset.pattern.permute.xlu0 0
  %278 = vperm.xlu0 %277, %v125
  %v279 = vpop.permute.xlu0 %278
  %282 = vset.pattern.permute.xlu0 0
  %283 = vperm.xlu0 %282, %v126
  %v284 = vpop.permute.xlu0 %283
  %287 = vset.pattern.permute.xlu0 0
  %288 = vperm.xlu0 %287, %v127
  %v289 = vpop.permute.xlu0 %288
  %292 = vset.pattern.permute.xlu0 0
  %293 = vperm.xlu0 %292, %v128
  %v294 = vpop.permute.xlu0 %293
  %297 = vset.pattern.permute.xlu0 0
  %298 = vperm.xlu0 %297, %v129
  %v299 = vpop.permute.xlu0 %298
  %302 = vset.pattern.permute.xlu0 0
  %303 = vperm.xlu0 %302, %v130
  %v304 = vpop.permute.xlu0 %303
  %307 = vset.pattern.permute.xlu0 0
  %308 = vperm.xlu0 %307, %v131
  %v309 = vpop.permute.xlu0 %308
  %312 = vset.pattern.permute.xlu0 0
  %313 = vperm.xlu0 %312, %v132
  %v314 = vpop.permute.xlu0 %313
  %317 = vset.pattern.permute.xlu0 0
  %318 = vperm.xlu0 %317, %v133
  %v319 = vpop.permute.xlu0 %318
  %322 = vset.pattern.permute.xlu0 0
  %323 = vperm.xlu0 %322, %v134
  %v324 = vpop.permute.xlu0 %323
  %327 = vset.pattern.permute.xlu0 0
  %328 = vperm.xlu0 %327, %v135
  %v329 = vpop.permute.xlu0 %328
  %332 = vset.pattern.permute.xlu0 0
  %333 = vperm.xlu0 %332, %v136
  %v334 = vpop.permute.xlu0 %333
  %337 = vset.pattern.permute.xlu0 0
  %338 = vperm.xlu0 %337, %v137
  %v339 = vpop.permute.xlu0 %338
  %342 = vset.pattern.permute.xlu0 0
  %343 = vperm.xlu0 %342, %v138
  %v344 = vpop.permute.xlu0 %343
  %347 = vset.pattern.permute.xlu0 0
  %348 = vperm.xlu0 %347, %v139
  %v349 = vpop.permute.xlu0 %348
  %352 = vset.pattern.permute.xlu0 0
  %353 = vperm.xlu0 %352, %v140
  %v354 = vpop.permute.xlu0 %353
  %357 = vset.pattern.permute.xlu0 0
  %358 = vperm.xlu0 %357, %v141
  %v359 = vpop.permute.xlu0 %358
  %362 = vset.pattern.permute.xlu0 0
  %363 = vperm.xlu0 %362, %v142
  %v364 = vpop.permute.xlu0 %363
  %367 = vset.pattern.permute.xlu0 0
  %368 = vperm.xlu0 %367, %v143
  %v369 = vpop.permute.xlu0 %368
  %372 = vset.pattern.permute.xlu0 0
  %373 = vperm.xlu0 %372, %v144
  %v374 = vpop.permute.xlu0 %373
  %377 = vset.pattern.permute.xlu0 0
  %378 = vperm.xlu0 %377, %v145
  %v379 = vpop.permute.xlu0 %378
  %382 = vset.pattern.permute.xlu0 0
  %383 = vperm.xlu0 %382, %v146
  %v384 = vpop.permute.xlu0 %383
  %387 = vset.pattern.permute.xlu0 0
  %388 = vperm.xlu0 %387, %v147
  %v389 = vpop.permute.xlu0 %388
  %392 = vset.pattern.permute.xlu0 0
  %393 = vperm.xlu0 %392, %v148
  %v394 = vpop.permute.xlu0 %393
  %397 = vset.pattern.permute.xlu0 0
  %398 = vperm.xlu0 %397, %v149
  %v399 = vpop.permute.xlu0 %398
  %402 = vset.pattern.permute.xlu0 0
  %403 = vperm.xlu0 %402, %v150
  %v404 = vpop.permute.xlu0 %403
  %407 = vset.pattern.permute.xlu0 0
  %408 = vperm.xlu0 %407, %v151
  %v409 = vpop.permute.xlu0 %408
  %412 = vset.pattern.permute.xlu0 0
  %413 = vperm.xlu0 %412, %v152
  %v414 = vpop.permute.xlu0 %413
  %417 = vset.pattern.permute.xlu0 0
  %418 = vperm.xlu0 %417, %v153
  %v419 = vpop.permute.xlu0 %418
  %422 = vset.pattern.permute.xlu0 0
  %423 = vperm.xlu0 %422, %v154
  %v424 = vpop.permute.xlu0 %423
  %427 = vset.pattern.permute.xlu0 0
  %428 = vperm.xlu0 %427, %v155
  %v429 = vpop.permute.xlu0 %428
  %432 = vset.pattern.permute.xlu0 0
  %433 = vperm.xlu0 %432, %v156
  %v434 = vpop.permute.xlu0 %433
  %437 = vset.pattern.permute.xlu0 0
  %438 = vperm.xlu0 %437, %v157
  %v439 = vpop.permute.xlu0 %438
  %442 = vset.pattern.permute.xlu0 0
  %443 = vperm.xlu0 %442, %v158
  %v444 = vpop.permute.xlu0 %443
  %447 = vset.pattern.permute.xlu0 0
  %448 = vperm.xlu0 %447, %v159
  %v449 = vpop.permute.xlu0 %448
  %452 = vset.pattern.permute.xlu0 0
  %453 = vperm.xlu0 %452, %v160
  %v454 = vpop.permute.xlu0 %453
  %457 = vset.pattern.permute.xlu0 0
  %458 = vperm.xlu0 %457, %v161
  %v459 = vpop.permute.xlu0 %458
  %462 = vset.pattern.permute.xlu0 0
  %463 = vperm.xlu0 %462, %v162
  %v464 = vpop.permute.xlu0 %463
  %467 = vset.pattern.permute.xlu0 0
  %468 = vperm.xlu0 %467, %v163
  %v469 = vpop.permute.xlu0 %468
  %472 = vset.pattern.permute.xlu0 0
  %473 = vperm.xlu0 %472, %v164
  %v474 = vpop.permute.xlu0 %473
  %477 = vset.pattern.permute.xlu0 0
  %478 = vperm.xlu0 %477, %v165
  %v479 = vpop.permute.xlu0 %478
  %482 = vset.pattern.permute.xlu0 0
  %483 = vperm.xlu0 %482, %v166
  %v484 = vpop.permute.xlu0 %483
  %487 = vset.pattern.permute.xlu0 0
  %488 = vperm.xlu0 %487, %v167
  %v489 = vpop.permute.xlu0 %488
  %492 = vset.pattern.permute.xlu0 0
  %493 = vperm.xlu0 %492, %v168
  %v494 = vpop.permute.xlu0 %493
  %497 = vset.pattern.permute.xlu0 0
  %498 = vperm.xlu0 %497, %v169
  %v499 = vpop.permute.xlu0 %498
  %502 = vset.pattern.permute.xlu0 0
  %503 = vperm.xlu0 %502, %v170
  %v504 = vpop.permute.xlu0 %503
  %507 = vset.pattern.permute.xlu0 0
  %508 = vperm.xlu0 %507, %v171
  %v509 = vpop.permute.xlu0 %508
  %512 = vset.pattern.permute.xlu0 0
  %513 = vperm.xlu0 %512, %v172
  %v514 = vpop.permute.xlu0 %513
  %517 = vset.pattern.permute.xlu0 0
  %518 = vperm.xlu0 %517, %v173
  %v519 = vpop.permute.xlu0 %518
  %522 = vset.pattern.permute.xlu0 0
  %523 = vperm.xlu0 %522, %v174
  %v524 = vpop.permute.xlu0 %523
  %527 = vset.pattern.permute.xlu0 0
  %528 = vperm.xlu0 %527, %v175
  %v529 = vpop.permute.xlu0 %528
  %532 = vset.pattern.permute.xlu0 0
  %533 = vperm.xlu0 %532, %v176
  %v534 = vpop.permute.xlu0 %533
  %537 = vset.pattern.permute.xlu0 0
  %538 = vperm.xlu0 %537, %v177
  %v539 = vpop.permute.xlu0 %538
  %542 = vset.pattern.permute.xlu0 0
  %543 = vperm.xlu0 %542, %v178
  %v544 = vpop.permute.xlu0 %543
  %547 = vset.pattern.permute.xlu0 0
  %548 = vperm.xlu0 %547, %v179
  %v549 = vpop.permute.xlu0 %548
  %552 = vset.pattern.permute.xlu0 0
  %553 = vperm.xlu0 %552, %v180
  %v554 = vpop.permute.xlu0 %553
  %vm556 = vcmask 719872
  %v558 = vsel %vm556, %v20, 0
  %v561 = vsel %vm556, %v21, 0
  %v564 = vsel %vm556, %v22, 0
  %v567 = vsel %vm556, %v23, 0
  %v570 = vsel %vm556, %v24, 0
  %v573 = vsel %vm556, %v25, 0
  %v576 = vsel %vm556, %v26, 0
  %v579 = vsel %vm556, %v27, 0
  %v582 = vsel %vm556, %v28, 0
  %v585 = vsel %vm556, %v29, 0
  %v588 = vsel %vm556, %v30, 0
  %v591 = vsel %vm556, %v31, 0
  %v594 = vsel %vm556, %v32, 0
  %v597 = vsel %vm556, %v33, 0
  %v600 = vsel %vm556, %v34, 0
  %v603 = vsel %vm556, %v35, 0
  %v606 = vsel %vm556, %v36, 0
  %v609 = vsel %vm556, %v37, 0
  %v612 = vsel %vm556, %v38, 0
  %v615 = vsel %vm556, %v39, 0
  %v618 = vsel %vm556, %v40, 0
  %v621 = vsel %vm556, %v41, 0
  %v624 = vsel %vm556, %v42, 0
  %v627 = vsel %vm556, %v43, 0
  %v630 = vsel %vm556, %v44, 0
  %v633 = vsel %vm556, %v45, 0
  %v636 = vsel %vm556, %v46, 0
  %v639 = vsel %vm556, %v47, 0
  %v642 = vsel %vm556, %v48, 0
  %v645 = vsel %vm556, %v49, 0
  %v648 = vsel %vm556, %v50, 0
  %v651 = vsel %vm556, %v51, 0
  %v654 = vsel %vm556, %v52, 0
  %v657 = vsel %vm556, %v53, 0
  %v660 = vsel %vm556, %v54, 0
  %v663 = vsel %vm556, %v55, 0
  %v666 = vsel %vm556, %v56, 0
  %v669 = vsel %vm556, %v57, 0
  %v672 = vsel %vm556, %v58, 0
  %v675 = vsel %vm556, %v59, 0
  %v678 = vsel %vm556, %v60, 0
  %v681 = vsel %vm556, %v61, 0
  %v684 = vsel %vm556, %v62, 0
  %v687 = vsel %vm556, %v63, 0
  %v690 = vsel %vm556, %v64, 0
  %v693 = vsel %vm556, %v65, 0
  %v696 = vsel %vm556, %v66, 0
  %v699 = vsel %vm556, %v67, 0
  %v702 = vsel %vm556, %v68, 0
  %v705 = vsel %vm556, %v69, 0
  %v708 = vsel %vm556, %v70, 0
  %v711 = vsel %vm556, %v71, 0
  %v714 = vsel %vm556, %v72, 0
  %v717 = vsel %vm556, %v73, 0
  %v720 = vsel %vm556, %v74, 0
  %v723 = vsel %vm556, %v75, 0
  %v726 = vsel %vm556, %v76, 0
  %v729 = vsel %vm556, %v77, 0
  %v732 = vsel %vm556, %v78, 0
  %v735 = vsel %vm556, %v79, 0
  %v738 = vsel %vm556, %v80, 0
  %v741 = vsel %vm556, %v81, 0
  %v744 = vsel %vm556, %v82, 0
  %v747 = vsel %vm556, %v83, 0
  %v750 = vsel %vm556, %v84, 0
  %v753 = vsel %vm556, %v85, 0
  %v756 = vsel %vm556, %v86, 0
  %v759 = vsel %vm556, %v87, 0
  %v762 = vsel %vm556, %v88, 0
  %v765 = vsel %vm556, %v89, 0
  %v768 = vsel %vm556, %v90, 0
  %v771 = vsel %vm556, %v91, 0
  %v774 = vsel %vm556, %v92, 0
  %v777 = vsel %vm556, %v93, 0
  %v780 = vsel %vm556, %v94, 0
  %782 = vmatprep.subr.mxu0 0.0
  %783 = vmatpush1.msra.mxu0 0.0
  %784 = vmatprep.subr.mxu0 0.0
  %785 = vmatpush1.msra.mxu0 0.0
  %786 = vmatprep.subr.mxu0 0.0
  %787 = vmatpush1.msra.mxu0 0.0
  %788 = vmatprep.subr.mxu0 0.0
  %789 = vmatpush1.msra.mxu0 0.0
  %790 = vmatprep.subr.mxu0 0.0
  %791 = vmatpush1.msra.mxu0 0.0
  %792 = vmatprep.subr.mxu0 0.0
  %793 = vmatpush1.msra.mxu0 %v105
  %794 = vmatprep.subr.mxu0 0.0
  %795 = vmatpush1.msra.mxu0 %v104
  %796 = vmatprep.subr.mxu0 0.0
  %797 = vmatpush1.msra.mxu0 %v103
  %798 = vmatprep.subr.mxu0 0.0
  %799 = vmatpush1.msra.mxu0 %v102
  %800 = vmatprep.subr.mxu0 0.0
  %801 = vmatpush1.msra.mxu0 %v101
  %802 = vmatprep.subr.mxu0 0.0
  %803 = vmatpush1.msra.mxu0 %v100
  %804 = vmatprep.subr.mxu0 0.0
  %805 = vmatpush1.msra.mxu0 %v99
  %806 = vmatprep.subr.mxu0 0.0
  %807 = vmatpush1.msra.mxu0 %v98
  %808 = vmatprep.subr.mxu0 0.0
  %809 = vmatpush1.msra.mxu0 %v97
  %810 = vmatprep.subr.mxu0 0.0
  %811 = vmatpush1.msra.mxu0 %v96
  %812 = vmatprep.subr.mxu0 0.0
  %813 = vmatpush1.msra.mxu0 %v95
  %814 = vmatprep.subr.mxu0 0.0
  %815 = vmatpush2.msra.mxu0 0.0
  %816 = vmatprep.subr.mxu0 0.0
  %817 = vmatpush2.msra.mxu0 0.0
  %818 = vmatprep.subr.mxu0 0.0
  %819 = vmatpush2.msra.mxu0 0.0
  %820 = vmatprep.subr.mxu0 0.0
  %821 = vmatpush2.msra.mxu0 0.0
  %822 = vmatprep.subr.mxu0 0.0
  %823 = vmatpush2.msra.mxu0 0.0
  %824 = vmatprep.subr.mxu0 0.0
  %825 = vmatpush2.msra.mxu0 0.0
  %826 = vmatprep.subr.mxu0 0.0
  %827 = vmatpush2.msra.mxu0 0.0
  %828 = vmatprep.subr.mxu0 0.0
  %829 = vmatpush2.msra.mxu0 0.0
  %830 = vmatprep.subr.mxu0 0.0
  %831 = vmatpush2.msra.mxu0 0.0
  %832 = vmatprep.subr.mxu0 0.0
  %833 = vmatpush2.msra.mxu0 0.0
  %834 = vmatprep.subr.mxu0 0.0
  %835 = vmatpush2.msra.mxu0 0.0
  %836 = vmatprep.subr.mxu0 0.0
  %837 = vmatpush2.msra.mxu0 0.0
  %838 = vmatprep.subr.mxu0 0.0
  %839 = vmatpush2.msra.mxu0 0.0
  %840 = vmatprep.subr.mxu0 0.0
  %841 = vmatpush2.msra.mxu0 0.0
  %842 = vmatprep.subr.mxu0 0.0
  %843 = vmatpush2.msra.mxu0 0.0
  %844 = vmatprep.subr.mxu0 0.0
  %845 = vmatpush2.msra.mxu0 0.0
  %846 = vmatprep.mubr.f32.mxu0 0.0
  %847 = vmatmul.mubr.f32.gmra.mxu0 %v558
  %v848 = vpop.f32.mrf.mxu0
  %v849 = vadd.f32 %v184, %v848
  %v850 = vpop.f32.mrf.mxu0
  %851 = vmatprep.mubr.f32.mxu0 0.0
  %852 = vmatmul.mubr.f32.gmra.mxu0 %v561
  %v853 = vpop.f32.mrf.mxu0
  %v854 = vadd.f32 %v189, %v853
  %v855 = vpop.f32.mrf.mxu0
  %856 = vmatprep.mubr.f32.mxu0 0.0
  %857 = vmatmul.mubr.f32.gmra.mxu0 %v564
  %v858 = vpop.f32.mrf.mxu0
  %v859 = vadd.f32 %v194, %v858
  %v860 = vpop.f32.mrf.mxu0
  %861 = vmatprep.mubr.f32.mxu0 0.0
  %862 = vmatmul.mubr.f32.gmra.mxu0 %v567
  %v863 = vpop.f32.mrf.mxu0
  %v864 = vadd.f32 %v199, %v863
  %v865 = vpop.f32.mrf.mxu0
  %866 = vmatprep.mubr.f32.mxu0 0.0
  %867 = vmatmul.mubr.f32.gmra.mxu0 %v570
  %v868 = vpop.f32.mrf.mxu0
  %v869 = vadd.f32 %v204, %v868
  %v870 = vpop.f32.mrf.mxu0
  %871 = vmatprep.mubr.f32.mxu0 0.0
  %872 = vmatmul.mubr.f32.gmra.mxu0 %v573
  %v873 = vpop.f32.mrf.mxu0
  %v874 = vadd.f32 %v209, %v873
  %v875 = vpop.f32.mrf.mxu0
  %876 = vmatprep.mubr.f32.mxu0 0.0
  %877 = vmatmul.mubr.f32.gmra.mxu0 %v576
  %v878 = vpop.f32.mrf.mxu0
  %v879 = vadd.f32 %v214, %v878
  %v880 = vpop.f32.mrf.mxu0
  %881 = vmatprep.mubr.f32.mxu0 0.0
  %882 = vmatmul.mubr.f32.gmra.mxu0 %v579
  %v883 = vpop.f32.mrf.mxu0
  %v884 = vadd.f32 %v219, %v883
  %v885 = vpop.f32.mrf.mxu0
  %886 = vmatprep.mubr.f32.mxu0 0.0
  %887 = vmatmul.mubr.f32.gmra.mxu0 %v582
  %v888 = vpop.f32.mrf.mxu0
  %v889 = vadd.f32 %v224, %v888
  %v890 = vpop.f32.mrf.mxu0
  %891 = vmatprep.mubr.f32.mxu0 0.0
  %892 = vmatmul.mubr.f32.gmra.mxu0 %v585
  %v893 = vpop.f32.mrf.mxu0
  %v894 = vadd.f32 %v229, %v893
  %v895 = vpop.f32.mrf.mxu0
  %896 = vmatprep.mubr.f32.mxu0 0.0
  %897 = vmatmul.mubr.f32.gmra.mxu0 %v588
  %v898 = vpop.f32.mrf.mxu0
  %v899 = vadd.f32 %v234, %v898
  %v900 = vpop.f32.mrf.mxu0
  %901 = vmatprep.mubr.f32.mxu0 0.0
  %902 = vmatmul.mubr.f32.gmra.mxu0 %v591
  %v903 = vpop.f32.mrf.mxu0
  %v904 = vadd.f32 %v239, %v903
  %v905 = vpop.f32.mrf.mxu0
  %906 = vmatprep.mubr.f32.mxu0 0.0
  %907 = vmatmul.mubr.f32.gmra.mxu0 %v594
  %v908 = vpop.f32.mrf.mxu0
  %v909 = vadd.f32 %v244, %v908
  %v910 = vpop.f32.mrf.mxu0
  %911 = vmatprep.mubr.f32.mxu0 0.0
  %912 = vmatmul.mubr.f32.gmra.mxu0 %v597
  %v913 = vpop.f32.mrf.mxu0
  %v914 = vadd.f32 %v249, %v913
  %v915 = vpop.f32.mrf.mxu0
  %916 = vmatprep.mubr.f32.mxu0 0.0
  %917 = vmatmul.mubr.f32.gmra.mxu0 %v600
  %v918 = vpop.f32.mrf.mxu0
  %v919 = vadd.f32 %v254, %v918
  %v920 = vpop.f32.mrf.mxu0
  %921 = vmatprep.mubr.f32.mxu0 0.0
  %922 = vmatmul.mubr.f32.gmra.mxu0 %v603
  %v923 = vpop.f32.mrf.mxu0
  %v924 = vadd.f32 %v259, %v923
  %v925 = vpop.f32.mrf.mxu0
  %926 = vmatprep.mubr.f32.mxu0 0.0
  %927 = vmatmul.mubr.f32.gmra.mxu0 %v606
  %v928 = vpop.f32.mrf.mxu0
  %v929 = vadd.f32 %v264, %v928
  %v930 = vpop.f32.mrf.mxu0
  %931 = vmatprep.mubr.f32.mxu0 0.0
  %932 = vmatmul.mubr.f32.gmra.mxu0 %v609
  %v933 = vpop.f32.mrf.mxu0
  %v934 = vadd.f32 %v269, %v933
  %v935 = vpop.f32.mrf.mxu0
  %936 = vmatprep.mubr.f32.mxu0 0.0
  %937 = vmatmul.mubr.f32.gmra.mxu0 %v612
  %v938 = vpop.f32.mrf.mxu0
  %v939 = vadd.f32 %v274, %v938
  %v940 = vpop.f32.mrf.mxu0
  %941 = vmatprep.mubr.f32.mxu0 0.0
  %942 = vmatmul.mubr.f32.gmra.mxu0 %v615
  %v943 = vpop.f32.mrf.mxu0
  %v944 = vadd.f32 %v279, %v943
  %v945 = vpop.f32.mrf.mxu0
  %946 = vmatprep.mubr.f32.mxu0 0.0
  %947 = vmatmul.mubr.f32.gmra.mxu0 %v618
  %v948 = vpop.f32.mrf.mxu0
  %v949 = vadd.f32 %v284, %v948
  %v950 = vpop.f32.mrf.mxu0
  %951 = vmatprep.mubr.f32.mxu0 0.0
  %952 = vmatmul.mubr.f32.gmra.mxu0 %v621
  %v953 = vpop.f32.mrf.mxu0
  %v954 = vadd.f32 %v289, %v953
  %v955 = vpop.f32.mrf.mxu0
  %956 = vmatprep.mubr.f32.mxu0 0.0
  %957 = vmatmul.mubr.f32.gmra.mxu0 %v624
  %v958 = vpop.f32.mrf.mxu0
  %v959 = vadd.f32 %v294, %v958
  %v960 = vpop.f32.mrf.mxu0
  %961 = vmatprep.mubr.f32.mxu0 0.0
  %962 = vmatmul.mubr.f32.gmra.mxu0 %v627
  %v963 = vpop.f32.mrf.mxu0
  %v964 = vadd.f32 %v299, %v963
  %v965 = vpop.f32.mrf.mxu0
  %966 = vmatprep.mubr.f32.mxu0 0.0
  %967 = vmatmul.mubr.f32.gmra.mxu0 %v630
  %v968 = vpop.f32.mrf.mxu0
  %v969 = vadd.f32 %v304, %v968
  %v970 = vpop.f32.mrf.mxu0
  %971 = vmatprep.mubr.f32.mxu0 0.0
  %972 = vmatmul.mubr.f32.gmra.mxu0 %v633
  %v973 = vpop.f32.mrf.mxu0
  %v974 = vadd.f32 %v309, %v973
  %v975 = vpop.f32.mrf.mxu0
  %976 = vmatprep.mubr.f32.mxu0 0.0
  %977 = vmatmul.mubr.f32.gmra.mxu0 %v636
  %v978 = vpop.f32.mrf.mxu0
  %v979 = vadd.f32 %v314, %v978
  %v980 = vpop.f32.mrf.mxu0
  %981 = vmatprep.mubr.f32.mxu0 0.0
  %982 = vmatmul.mubr.f32.gmra.mxu0 %v639
  %v983 = vpop.f32.mrf.mxu0
  %v984 = vadd.f32 %v319, %v983
  %v985 = vpop.f32.mrf.mxu0
  %986 = vmatprep.mubr.f32.mxu0 0.0
  %987 = vmatmul.mubr.f32.gmra.mxu0 %v642
  %v988 = vpop.f32.mrf.mxu0
  %v989 = vadd.f32 %v324, %v988
  %v990 = vpop.f32.mrf.mxu0
  %991 = vmatprep.mubr.f32.mxu0 0.0
  %992 = vmatmul.mubr.f32.gmra.mxu0 %v645
  %v993 = vpop.f32.mrf.mxu0
  %v994 = vadd.f32 %v329, %v993
  %v995 = vpop.f32.mrf.mxu0
  %996 = vmatprep.mubr.f32.mxu0 0.0
  %997 = vmatmul.mubr.f32.gmra.mxu0 %v648
  %v998 = vpop.f32.mrf.mxu0
  %v999 = vadd.f32 %v334, %v998
  %v1000 = vpop.f32.mrf.mxu0
  %1001 = vmatprep.mubr.f32.mxu0 0.0
  %1002 = vmatmul.mubr.f32.gmra.mxu0 %v651
  %v1003 = vpop.f32.mrf.mxu0
  %v1004 = vadd.f32 %v339, %v1003
  %v1005 = vpop.f32.mrf.mxu0
  %1006 = vmatprep.mubr.f32.mxu0 0.0
  %1007 = vmatmul.mubr.f32.gmra.mxu0 %v654
  %v1008 = vpop.f32.mrf.mxu0
  %v1009 = vadd.f32 %v344, %v1008
  %v1010 = vpop.f32.mrf.mxu0
  %1011 = vmatprep.mubr.f32.mxu0 0.0
  %1012 = vmatmul.mubr.f32.gmra.mxu0 %v657
  %v1013 = vpop.f32.mrf.mxu0
  %v1014 = vadd.f32 %v349, %v1013
  %v1015 = vpop.f32.mrf.mxu0
  %1016 = vmatprep.mubr.f32.mxu0 0.0
  %1017 = vmatmul.mubr.f32.gmra.mxu0 %v660
  %v1018 = vpop.f32.mrf.mxu0
  %v1019 = vadd.f32 %v354, %v1018
  %v1020 = vpop.f32.mrf.mxu0
  %1021 = vmatprep.mubr.f32.mxu0 0.0
  %1022 = vmatmul.mubr.f32.gmra.mxu0 %v663
  %v1023 = vpop.f32.mrf.mxu0
  %v1024 = vadd.f32 %v359, %v1023
  %v1025 = vpop.f32.mrf.mxu0
  %1026 = vmatprep.mubr.f32.mxu0 0.0
  %1027 = vmatmul.mubr.f32.gmra.mxu0 %v666
  %v1028 = vpop.f32.mrf.mxu0
  %v1029 = vadd.f32 %v364, %v1028
  %v1030 = vpop.f32.mrf.mxu0
  %1031 = vmatprep.mubr.f32.mxu0 0.0
  %1032 = vmatmul.mubr.f32.gmra.mxu0 %v669
  %v1033 = vpop.f32.mrf.mxu0
  %v1034 = vadd.f32 %v369, %v1033
  %v1035 = vpop.f32.mrf.mxu0
  %1036 = vmatprep.mubr.f32.mxu0 0.0
  %1037 = vmatmul.mubr.f32.gmra.mxu0 %v672
  %v1038 = vpop.f32.mrf.mxu0
  %v1039 = vadd.f32 %v374, %v1038
  %v1040 = vpop.f32.mrf.mxu0
  %1041 = vmatprep.mubr.f32.mxu0 0.0
  %1042 = vmatmul.mubr.f32.gmra.mxu0 %v675
  %v1043 = vpop.f32.mrf.mxu0
  %v1044 = vadd.f32 %v379, %v1043
  %v1045 = vpop.f32.mrf.mxu0
  %1046 = vmatprep.mubr.f32.mxu0 0.0
  %1047 = vmatmul.mubr.f32.gmra.mxu0 %v678
  %v1048 = vpop.f32.mrf.mxu0
  %v1049 = vadd.f32 %v384, %v1048
  %v1050 = vpop.f32.mrf.mxu0
  %1051 = vmatprep.mubr.f32.mxu0 0.0
  %1052 = vmatmul.mubr.f32.gmra.mxu0 %v681
  %v1053 = vpop.f32.mrf.mxu0
  %v1054 = vadd.f32 %v389, %v1053
  %v1055 = vpop.f32.mrf.mxu0
  %1056 = vmatprep.mubr.f32.mxu0 0.0
  %1057 = vmatmul.mubr.f32.gmra.mxu0 %v684
  %v1058 = vpop.f32.mrf.mxu0
  %v1059 = vadd.f32 %v394, %v1058
  %v1060 = vpop.f32.mrf.mxu0
  %1061 = vmatprep.mubr.f32.mxu0 0.0
  %1062 = vmatmul.mubr.f32.gmra.mxu0 %v687
  %v1063 = vpop.f32.mrf.mxu0
  %v1064 = vadd.f32 %v399, %v1063
  %v1065 = vpop.f32.mrf.mxu0
  %1066 = vmatprep.mubr.f32.mxu0 0.0
  %1067 = vmatmul.mubr.f32.gmra.mxu0 %v690
  %v1068 = vpop.f32.mrf.mxu0
  %v1069 = vadd.f32 %v404, %v1068
  %v1070 = vpop.f32.mrf.mxu0
  %1071 = vmatprep.mubr.f32.mxu0 0.0
  %1072 = vmatmul.mubr.f32.gmra.mxu0 %v693
  %v1073 = vpop.f32.mrf.mxu0
  %v1074 = vadd.f32 %v409, %v1073
  %v1075 = vpop.f32.mrf.mxu0
  %1076 = vmatprep.mubr.f32.mxu0 0.0
  %1077 = vmatmul.mubr.f32.gmra.mxu0 %v696
  %v1078 = vpop.f32.mrf.mxu0
  %v1079 = vadd.f32 %v414, %v1078
  %v1080 = vpop.f32.mrf.mxu0
  %1081 = vmatprep.mubr.f32.mxu0 0.0
  %1082 = vmatmul.mubr.f32.gmra.mxu0 %v699
  %v1083 = vpop.f32.mrf.mxu0
  %v1084 = vadd.f32 %v419, %v1083
  %v1085 = vpop.f32.mrf.mxu0
  %1086 = vmatprep.mubr.f32.mxu0 0.0
  %1087 = vmatmul.mubr.f32.gmra.mxu0 %v702
  %v1088 = vpop.f32.mrf.mxu0
  %v1089 = vadd.f32 %v424, %v1088
  %v1090 = vpop.f32.mrf.mxu0
  %1091 = vmatprep.mubr.f32.mxu0 0.0
  %1092 = vmatmul.mubr.f32.gmra.mxu0 %v705
  %v1093 = vpop.f32.mrf.mxu0
  %v1094 = vadd.f32 %v429, %v1093
  %v1095 = vpop.f32.mrf.mxu0
  %1096 = vmatprep.mubr.f32.mxu0 0.0
  %1097 = vmatmul.mubr.f32.gmra.mxu0 %v708
  %v1098 = vpop.f32.mrf.mxu0
  %v1099 = vadd.f32 %v434, %v1098
  %v1100 = vpop.f32.mrf.mxu0
  %1101 = vmatprep.mubr.f32.mxu0 0.0
  %1102 = vmatmul.mubr.f32.gmra.mxu0 %v711
  %v1103 = vpop.f32.mrf.mxu0
  %v1104 = vadd.f32 %v439, %v1103
  %v1105 = vpop.f32.mrf.mxu0
  %1106 = vmatprep.mubr.f32.mxu0 0.0
  %1107 = vmatmul.mubr.f32.gmra.mxu0 %v714
  %v1108 = vpop.f32.mrf.mxu0
  %v1109 = vadd.f32 %v444, %v1108
  %v1110 = vpop.f32.mrf.mxu0
  %1111 = vmatprep.mubr.f32.mxu0 0.0
  %1112 = vmatmul.mubr.f32.gmra.mxu0 %v717
  %v1113 = vpop.f32.mrf.mxu0
  %v1114 = vadd.f32 %v449, %v1113
  %v1115 = vpop.f32.mrf.mxu0
  %1116 = vmatprep.mubr.f32.mxu0 0.0
  %1117 = vmatmul.mubr.f32.gmra.mxu0 %v720
  %v1118 = vpop.f32.mrf.mxu0
  %v1119 = vadd.f32 %v454, %v1118
  %v1120 = vpop.f32.mrf.mxu0
  %1121 = vmatprep.mubr.f32.mxu0 0.0
  %1122 = vmatmul.mubr.f32.gmra.mxu0 %v723
  %v1123 = vpop.f32.mrf.mxu0
  %v1124 = vadd.f32 %v459, %v1123
  %v1125 = vpop.f32.mrf.mxu0
  %1126 = vmatprep.mubr.f32.mxu0 0.0
  %1127 = vmatmul.mubr.f32.gmra.mxu0 %v726
  %v1128 = vpop.f32.mrf.mxu0
  %v1129 = vadd.f32 %v464, %v1128
  %v1130 = vpop.f32.mrf.mxu0
  %1131 = vmatprep.mubr.f32.mxu0 0.0
  %1132 = vmatmul.mubr.f32.gmra.mxu0 %v729
  %v1133 = vpop.f32.mrf.mxu0
  %v1134 = vadd.f32 %v469, %v1133
  %v1135 = vpop.f32.mrf.mxu0
  %1136 = vmatprep.mubr.f32.mxu0 0.0
  %1137 = vmatmul.mubr.f32.gmra.mxu0 %v732
  %v1138 = vpop.f32.mrf.mxu0
  %v1139 = vadd.f32 %v474, %v1138
  %v1140 = vpop.f32.mrf.mxu0
  %1141 = vmatprep.mubr.f32.mxu0 0.0
  %1142 = vmatmul.mubr.f32.gmra.mxu0 %v735
  %v1143 = vpop.f32.mrf.mxu0
  %v1144 = vadd.f32 %v479, %v1143
  %v1145 = vpop.f32.mrf.mxu0
  %1146 = vmatprep.mubr.f32.mxu0 0.0
  %1147 = vmatmul.mubr.f32.gmra.mxu0 %v738
  %v1148 = vpop.f32.mrf.mxu0
  %v1149 = vadd.f32 %v484, %v1148
  %v1150 = vpop.f32.mrf.mxu0
  %1151 = vmatprep.mubr.f32.mxu0 0.0
  %1152 = vmatmul.mubr.f32.gmra.mxu0 %v741
  %v1153 = vpop.f32.mrf.mxu0
  %v1154 = vadd.f32 %v489, %v1153
  %v1155 = vpop.f32.mrf.mxu0
  %1156 = vmatprep.mubr.f32.mxu0 0.0
  %1157 = vmatmul.mubr.f32.gmra.mxu0 %v744
  %v1158 = vpop.f32.mrf.mxu0
  %v1159 = vadd.f32 %v494, %v1158
  %v1160 = vpop.f32.mrf.mxu0
  %1161 = vmatprep.mubr.f32.mxu0 0.0
  %1162 = vmatmul.mubr.f32.gmra.mxu0 %v747
  %v1163 = vpop.f32.mrf.mxu0
  %v1164 = vadd.f32 %v499, %v1163
  %v1165 = vpop.f32.mrf.mxu0
  %1166 = vmatprep.mubr.f32.mxu0 0.0
  %1167 = vmatmul.mubr.f32.gmra.mxu0 %v750
  %v1168 = vpop.f32.mrf.mxu0
  %v1169 = vadd.f32 %v504, %v1168
  %v1170 = vpop.f32.mrf.mxu0
  %1171 = vmatprep.mubr.f32.mxu0 0.0
  %1172 = vmatmul.mubr.f32.gmra.mxu0 %v753
  %v1173 = vpop.f32.mrf.mxu0
  %v1174 = vadd.f32 %v509, %v1173
  %v1175 = vpop.f32.mrf.mxu0
  %1176 = vmatprep.mubr.f32.mxu0 0.0
  %1177 = vmatmul.mubr.f32.gmra.mxu0 %v756
  %v1178 = vpop.f32.mrf.mxu0
  %v1179 = vadd.f32 %v514, %v1178
  %v1180 = vpop.f32.mrf.mxu0
  %1181 = vmatprep.mubr.f32.mxu0 0.0
  %1182 = vmatmul.mubr.f32.gmra.mxu0 %v759
  %v1183 = vpop.f32.mrf.mxu0
  %v1184 = vadd.f32 %v519, %v1183
  %v1185 = vpop.f32.mrf.mxu0
  %1186 = vmatprep.mubr.f32.mxu0 0.0
  %1187 = vmatmul.mubr.f32.gmra.mxu0 %v762
  %v1188 = vpop.f32.mrf.mxu0
  %v1189 = vadd.f32 %v524, %v1188
  %v1190 = vpop.f32.mrf.mxu0
  %1191 = vmatprep.mubr.f32.mxu0 0.0
  %1192 = vmatmul.mubr.f32.gmra.mxu0 %v765
  %v1193 = vpop.f32.mrf.mxu0
  %v1194 = vadd.f32 %v529, %v1193
  %v1195 = vpop.f32.mrf.mxu0
  %1196 = vmatprep.mubr.f32.mxu0 0.0
  %1197 = vmatmul.mubr.f32.gmra.mxu0 %v768
  %v1198 = vpop.f32.mrf.mxu0
  %v1199 = vadd.f32 %v534, %v1198
  %v1200 = vpop.f32.mrf.mxu0
  %1201 = vmatprep.mubr.f32.mxu0 0.0
  %1202 = vmatmul.mubr.f32.gmra.mxu0 %v771
  %v1203 = vpop.f32.mrf.mxu0
  %v1204 = vadd.f32 %v539, %v1203
  %v1205 = vpop.f32.mrf.mxu0
  %1206 = vmatprep.mubr.f32.mxu0 0.0
  %1207 = vmatmul.mubr.f32.gmra.mxu0 %v774
  %v1208 = vpop.f32.mrf.mxu0
  %v1209 = vadd.f32 %v544, %v1208
  %v1210 = vpop.f32.mrf.mxu0
  %1211 = vmatprep.mubr.f32.mxu0 0.0
  %1212 = vmatmul.mubr.f32.gmra.mxu0 %v777
  %v1213 = vpop.f32.mrf.mxu0
  %v1214 = vadd.f32 %v549, %v1213
  %v1215 = vpop.f32.mrf.mxu0
  %1216 = vmatprep.mubr.f32.mxu0 0.0
  %1217 = vmatmul.mubr.f32.gmra.mxu0 %v780
  %v1218 = vpop.f32.mrf.mxu0
  %v1219 = vadd.f32 %v554, %v1218
  %v1220 = vpop.f32.mrf.mxu0
  %1221 = vdwg.mxu0
  %v1222 = vmax.f32 %v849, 0.0
  %v1223 = vmax.f32 %v854, 0.0
  %v1224 = vmax.f32 %v859, 0.0
  %v1225 = vmax.f32 %v864, 0.0
  %v1226 = vmax.f32 %v869, 0.0
  %v1227 = vmax.f32 %v874, 0.0
  %v1228 = vmax.f32 %v879, 0.0
  %v1229 = vmax.f32 %v884, 0.0
  %v1230 = vmax.f32 %v889, 0.0
  %v1231 = vmax.f32 %v894, 0.0
  %v1232 = vmax.f32 %v899, 0.0
  %v1233 = vmax.f32 %v904, 0.0
  %v1234 = vmax.f32 %v909, 0.0
  %v1235 = vmax.f32 %v914, 0.0
  %v1236 = vmax.f32 %v919, 0.0
  %v1237 = vmax.f32 %v924, 0.0
  %v1238 = vmax.f32 %v929, 0.0
  %v1239 = vmax.f32 %v934, 0.0
  %v1240 = vmax.f32 %v939, 0.0
  %v1241 = vmax.f32 %v944, 0.0
  %v1242 = vmax.f32 %v949, 0.0
  %v1243 = vmax.f32 %v954, 0.0
  %v1244 = vmax.f32 %v959, 0.0
  %v1245 = vmax.f32 %v964, 0.0
  %v1246 = vmax.f32 %v969, 0.0
  %v1247 = vmax.f32 %v974, 0.0
  %v1248 = vmax.f32 %v979, 0.0
  %v1249 = vmax.f32 %v984, 0.0
  %v1250 = vmax.f32 %v989, 0.0
  %v1251 = vmax.f32 %v994, 0.0
  %v1252 = vmax.f32 %v999, 0.0
  %v1253 = vmax.f32 %v1004, 0.0
  %v1254 = vmax.f32 %v1009, 0.0
  %v1255 = vmax.f32 %v1014, 0.0
  %v1256 = vmax.f32 %v1019, 0.0
  %v1257 = vmax.f32 %v1024, 0.0
  %v1258 = vmax.f32 %v1029, 0.0
  %v1259 = vmax.f32 %v1034, 0.0
  %v1260 = vmax.f32 %v1039, 0.0
  %v1261 = vmax.f32 %v1044, 0.0
  %v1262 = vmax.f32 %v1049, 0.0
  %v1263 = vmax.f32 %v1054, 0.0
  %v1264 = vmax.f32 %v1059, 0.0
  %v1265 = vmax.f32 %v1064, 0.0
  %v1266 = vmax.f32 %v1069, 0.0
  %v1267 = vmax.f32 %v1074, 0.0
  %v1268 = vmax.f32 %v1079, 0.0
  %v1269 = vmax.f32 %v1084, 0.0
  %v1270 = vmax.f32 %v1089, 0.0
  %v1271 = vmax.f32 %v1094, 0.0
  %v1272 = vmax.f32 %v1099, 0.0
  %v1273 = vmax.f32 %v1104, 0.0
  %v1274 = vmax.f32 %v1109, 0.0
  %v1275 = vmax.f32 %v1114, 0.0
  %v1276 = vmax.f32 %v1119, 0.0
  %v1277 = vmax.f32 %v1124, 0.0
  %v1278 = vmax.f32 %v1129, 0.0
  %v1279 = vmax.f32 %v1134, 0.0
  %v1280 = vmax.f32 %v1139, 0.0
  %v1281 = vmax.f32 %v1144, 0.0
  %v1282 = vmax.f32 %v1149, 0.0
  %v1283 = vmax.f32 %v1154, 0.0
  %v1284 = vmax.f32 %v1159, 0.0
  %v1285 = vmax.f32 %v1164, 0.0
  %v1286 = vmax.f32 %v1169, 0.0
  %v1287 = vmax.f32 %v1174, 0.0
  %v1288 = vmax.f32 %v1179, 0.0
  %v1289 = vmax.f32 %v1184, 0.0
  %v1290 = vmax.f32 %v1189, 0.0
  %v1291 = vmax.f32 %v1194, 0.0
  %v1292 = vmax.f32 %v1199, 0.0
  %v1293 = vmax.f32 %v1204, 0.0
  %v1294 = vmax.f32 %v1209, 0.0
  %v1295 = vmax.f32 %v1214, 0.0
  %v1296 = vmax.f32 %v1219, 0.0
  %1297 = vst [vmem:[#allocation2] sm:$0xff] %v1222
  %1298 = vst [vmem:[#allocation2 + $0x8] sm:$0xff] %v1223
  %1299 = vst [vmem:[#allocation2 + $0x10] sm:$0xff] %v1224
  %1300 = vst [vmem:[#allocation2 + $0x18] sm:$0xff] %v1225
  %1301 = vst [vmem:[#allocation2 + $0x20] sm:$0xff] %v1226
  %1302 = vst [vmem:[#allocation2 + $0x28] sm:$0xff] %v1227
  %1303 = vst [vmem:[#allocation2 + $0x30] sm:$0xff] %v1228
  %1304 = vst [vmem:[#allocation2 + $0x38] sm:$0xff] %v1229
  %1305 = vst [vmem:[#allocation2 + $0x40] sm:$0xff] %v1230
  %1306 = vst [vmem:[#allocation2 + $0x48] sm:$0xff] %v1231
  %1307 = vst [vmem:[#allocation2 + $0x50] sm:$0xff] %v1232
  %1308 = vst [vmem:[#allocation2 + $0x58] sm:$0xff] %v1233
  %1309 = vst [vmem:[#allocation2 + $0x60] sm:$0xff] %v1234
  %1310 = vst [vmem:[#allocation2 + $0x68] sm:$0xff] %v1235
  %1311 = vst [vmem:[#allocation2 + $0x70] sm:$0xff] %v1236
  %1312 = vst [vmem:[#allocation2 + $0x78] sm:$0xff] %v1237
  %1313 = vst [vmem:[#allocation2 + $0x80] sm:$0xff] %v1238
  %1314 = vst [vmem:[#allocation2 + $0x88] sm:$0xff] %v1239
  %1315 = vst [vmem:[#allocation2 + $0x90] sm:$0xff] %v1240
  %1316 = vst [vmem:[#allocation2 + $0x98] sm:$0xff] %v1241
  %1317 = vst [vmem:[#allocation2 + $0xa0] sm:$0xff] %v1242
  %1318 = vst [vmem:[#allocation2 + $0xa8] sm:$0xff] %v1243
  %1319 = vst [vmem:[#allocation2 + $0xb0] sm:$0xff] %v1244
  %1320 = vst [vmem:[#allocation2 + $0xb8] sm:$0xff] %v1245
  %1321 = vst [vmem:[#allocation2 + $0xc0] sm:$0xff] %v1246
  %1322 = vst [vmem:[#allocation2 + $0xc8] sm:$0xff] %v1247
  %1323 = vst [vmem:[#allocation2 + $0xd0] sm:$0xff] %v1248
  %1324 = vst [vmem:[#allocation2 + $0xd8] sm:$0xff] %v1249
  %1325 = vst [vmem:[#allocation2 + $0xe0] sm:$0xff] %v1250
  %1326 = vst [vmem:[#allocation2 + $0xe8] sm:$0xff] %v1251
  %1327 = vst [vmem:[#allocation2 + $0xf0] sm:$0xff] %v1252
  %1328 = vst [vmem:[#allocation2 + $0xf8] sm:$0xff] %v1253
  %1329 = vst [vmem:[#allocation2 + $0x100] sm:$0xff] %v1254
  %1330 = vst [vmem:[#allocation2 + $0x108] sm:$0xff] %v1255
  %1331 = vst [vmem:[#allocation2 + $0x110] sm:$0xff] %v1256
  %1332 = vst [vmem:[#allocation2 + $0x118] sm:$0xff] %v1257
  %1333 = vst [vmem:[#allocation2 + $0x120] sm:$0xff] %v1258
  %1334 = vst [vmem:[#allocation2 + $0x128] sm:$0xff] %v1259
  %1335 = vst [vmem:[#allocation2 + $0x130] sm:$0xff] %v1260
  %1336 = vst [vmem:[#allocation2 + $0x138] sm:$0xff] %v1261
  %1337 = vst [vmem:[#allocation2 + $0x140] sm:$0xff] %v1262
  %1338 = vst [vmem:[#allocation2 + $0x148] sm:$0xff] %v1263
  %1339 = vst [vmem:[#allocation2 + $0x150] sm:$0xff] %v1264
  %1340 = vst [vmem:[#allocation2 + $0x158] sm:$0xff] %v1265
  %1341 = vst [vmem:[#allocation2 + $0x160] sm:$0xff] %v1266
  %1342 = vst [vmem:[#allocation2 + $0x168] sm:$0xff] %v1267
  %1343 = vst [vmem:[#allocation2 + $0x170] sm:$0xff] %v1268
  %1344 = vst [vmem:[#allocation2 + $0x178] sm:$0xff] %v1269
  %1345 = vst [vmem:[#allocation2 + $0x180] sm:$0xff] %v1270
  %1346 = vst [vmem:[#allocation2 + $0x188] sm:$0xff] %v1271
  %1347 = vst [vmem:[#allocation2 + $0x190] sm:$0xff] %v1272
  %1348 = vst [vmem:[#allocation2 + $0x198] sm:$0xff] %v1273
  %1349 = vst [vmem:[#allocation2 + $0x1a0] sm:$0xff] %v1274
  %1350 = vst [vmem:[#allocation2 + $0x1a8] sm:$0xff] %v1275
  %1351 = vst [vmem:[#allocation2 + $0x1b0] sm:$0xff] %v1276
  %1352 = vst [vmem:[#allocation2 + $0x1b8] sm:$0xff] %v1277
  %1353 = vst [vmem:[#allocation2 + $0x1c0] sm:$0xff] %v1278
  %1354 = vst [vmem:[#allocation2 + $0x1c8] sm:$0xff] %v1279
  %1355 = vst [vmem:[#allocation2 + $0x1d0] sm:$0xff] %v1280
  %1356 = vst [vmem:[#allocation2 + $0x1d8] sm:$0xff] %v1281
  %1357 = vst [vmem:[#allocation2 + $0x1e0] sm:$0xff] %v1282
  %1358 = vst [vmem:[#allocation2 + $0x1e8] sm:$0xff] %v1283
  %1359 = vst [vmem:[#allocation2 + $0x1f0] sm:$0xff] %v1284
  %1360 = vst [vmem:[#allocation2 + $0x1f8] sm:$0xff] %v1285
  %1361 = vst [vmem:[#allocation2 + $0x200] sm:$0xff] %v1286
  %1362 = vst [vmem:[#allocation2 + $0x208] sm:$0xff] %v1287
  %1363 = vst [vmem:[#allocation2 + $0x210] sm:$0xff] %v1288
  %1364 = vst [vmem:[#allocation2 + $0x218] sm:$0xff] %v1289
  %1365 = vst [vmem:[#allocation2 + $0x220] sm:$0xff] %v1290
  %1366 = vst [vmem:[#allocation2 + $0x228] sm:$0xff] %v1291
  %1367 = vst [vmem:[#allocation2 + $0x230] sm:$0xff] %v1292
  %1368 = vst [vmem:[#allocation2 + $0x238] sm:$0xff] %v1293
  %1369 = vst [vmem:[#allocation2 + $0x240] sm:$0xff] %v1294
  %1370 = vst [vmem:[#allocation2 + $0x248] sm:$0xff] %v1295
  %1371 = vst [vmem:[#allocation2 + $0x250] sm:$0xff] %v1296
  %v1372 = vld [vmem:[%s3] sm:$0xff]
  %v1373 = vld [vmem:[%s3 + $0x8] sm:$0xff]
  %v1374 = vld [vmem:[%s3 + $0x10] sm:$0xff]
  %v1375 = vld [vmem:[%s3 + $0x18] sm:$0xff]
  %v1376 = vld [vmem:[%s3 + $0x20] sm:$0xff]
  %v1377 = vld [vmem:[%s3 + $0x28] sm:$0xff]
  %v1378 = vld [vmem:[%s3 + $0x30] sm:$0xff]
  %v1379 = vld [vmem:[%s3 + $0x38] sm:$0xff]
  %v1380 = vld [vmem:[%s3 + $0x40] sm:$0xff]
  %v1381 = vld [vmem:[%s3 + $0x48] sm:$0xff]
  %v1382 = vld [vmem:[%s3 + $0x50] sm:$0xff]
  %v1383 = vld [vmem:[%s3 + $0x58] sm:$0xff]
  %v1384 = vld [vmem:[%s3 + $0x60] sm:$0xff]
  %v1385 = vld [vmem:[%s3 + $0x68] sm:$0xff]
  %v1386 = vld [vmem:[%s3 + $0x70] sm:$0xff]
  %v1387 = vld [vmem:[#allocation2] sm:$0xff]
  %v1388 = vld [vmem:[#allocation2 + $0x8] sm:$0xff]
  %v1389 = vld [vmem:[#allocation2 + $0x10] sm:$0xff]
  %v1390 = vld [vmem:[#allocation2 + $0x18] sm:$0xff]
  %v1391 = vld [vmem:[#allocation2 + $0x20] sm:$0xff]
  %v1392 = vld [vmem:[#allocation2 + $0x28] sm:$0xff]
  %v1393 = vld [vmem:[#allocation2 + $0x30] sm:$0xff]
  %v1394 = vld [vmem:[#allocation2 + $0x38] sm:$0xff]
  %v1395 = vld [vmem:[#allocation2 + $0x40] sm:$0xff]
  %v1396 = vld [vmem:[#allocation2 + $0x48] sm:$0xff]
  %v1397 = vld [vmem:[#allocation2 + $0x50] sm:$0xff]
  %v1398 = vld [vmem:[#allocation2 + $0x58] sm:$0xff]
  %v1399 = vld [vmem:[#allocation2 + $0x60] sm:$0xff]
  %v1400 = vld [vmem:[#allocation2 + $0x68] sm:$0xff]
  %v1401 = vld [vmem:[#allocation2 + $0x70] sm:$0xff]
  %v1402 = vld [vmem:[#allocation2 + $0x78] sm:$0xff]
  %v1403 = vld [vmem:[#allocation2 + $0x80] sm:$0xff]
  %v1404 = vld [vmem:[#allocation2 + $0x88] sm:$0xff]
  %v1405 = vld [vmem:[#allocation2 + $0x90] sm:$0xff]
  %v1406 = vld [vmem:[#allocation2 + $0x98] sm:$0xff]
  %v1407 = vld [vmem:[#allocation2 + $0xa0] sm:$0xff]
  %v1408 = vld [vmem:[#allocation2 + $0xa8] sm:$0xff]
  %v1409 = vld [vmem:[#allocation2 + $0xb0] sm:$0xff]
  %v1410 = vld [vmem:[#allocation2 + $0xb8] sm:$0xff]
  %v1411 = vld [vmem:[#allocation2 + $0xc0] sm:$0xff]
  %v1412 = vld [vmem:[#allocation2 + $0xc8] sm:$0xff]
  %v1413 = vld [vmem:[#allocation2 + $0xd0] sm:$0xff]
  %v1414 = vld [vmem:[#allocation2 + $0xd8] sm:$0xff]
  %v1415 = vld [vmem:[#allocation2 + $0xe0] sm:$0xff]
  %v1416 = vld [vmem:[#allocation2 + $0xe8] sm:$0xff]
  %v1417 = vld [vmem:[#allocation2 + $0xf0] sm:$0xff]
  %v1418 = vld [vmem:[#allocation2 + $0xf8] sm:$0xff]
  %v1419 = vld [vmem:[#allocation2 + $0x100] sm:$0xff]
  %v1420 = vld [vmem:[#allocation2 + $0x108] sm:$0xff]
  %v1421 = vld [vmem:[#allocation2 + $0x110] sm:$0xff]
  %v1422 = vld [vmem:[#allocation2 + $0x118] sm:$0xff]
  %v1423 = vld [vmem:[#allocation2 + $0x120] sm:$0xff]
  %v1424 = vld [vmem:[#allocation2 + $0x128] sm:$0xff]
  %v1425 = vld [vmem:[#allocation2 + $0x130] sm:$0xff]
  %v1426 = vld [vmem:[#allocation2 + $0x138] sm:$0xff]
  %v1427 = vld [vmem:[#allocation2 + $0x140] sm:$0xff]
  %v1428 = vld [vmem:[#allocation2 + $0x148] sm:$0xff]
  %v1429 = vld [vmem:[#allocation2 + $0x150] sm:$0xff]
  %v1430 = vld [vmem:[#allocation2 + $0x158] sm:$0xff]
  %v1431 = vld [vmem:[#allocation2 + $0x160] sm:$0xff]
  %v1432 = vld [vmem:[#allocation2 + $0x168] sm:$0xff]
  %v1433 = vld [vmem:[#allocation2 + $0x170] sm:$0xff]
  %v1434 = vld [vmem:[#allocation2 + $0x178] sm:$0xff]
  %v1435 = vld [vmem:[#allocation2 + $0x180] sm:$0xff]
  %v1436 = vld [vmem:[#allocation2 + $0x188] sm:$0xff]
  %v1437 = vld [vmem:[#allocation2 + $0x190] sm:$0xff]
  %v1438 = vld [vmem:[#allocation2 + $0x198] sm:$0xff]
  %v1439 = vld [vmem:[#allocation2 + $0x1a0] sm:$0xff]
  %v1440 = vld [vmem:[#allocation2 + $0x1a8] sm:$0xff]
  %v1441 = vld [vmem:[#allocation2 + $0x1b0] sm:$0xff]
  %v1442 = vld [vmem:[#allocation2 + $0x1b8] sm:$0xff]
  %v1443 = vld [vmem:[#allocation2 + $0x1c0] sm:$0xff]
  %v1444 = vld [vmem:[#allocation2 + $0x1c8] sm:$0xff]
  %v1445 = vld [vmem:[#allocation2 + $0x1d0] sm:$0xff]
  %v1446 = vld [vmem:[#allocation2 + $0x1d8] sm:$0xff]
  %v1447 = vld [vmem:[#allocation2 + $0x1e0] sm:$0xff]
  %v1448 = vld [vmem:[#allocation2 + $0x1e8] sm:$0xff]
  %v1449 = vld [vmem:[#allocation2 + $0x1f0] sm:$0xff]
  %v1450 = vld [vmem:[#allocation2 + $0x1f8] sm:$0xff]
  %v1451 = vld [vmem:[#allocation2 + $0x200] sm:$0xff]
  %v1452 = vld [vmem:[#allocation2 + $0x208] sm:$0xff]
  %v1453 = vld [vmem:[#allocation2 + $0x210] sm:$0xff]
  %v1454 = vld [vmem:[#allocation2 + $0x218] sm:$0xff]
  %v1455 = vld [vmem:[#allocation2 + $0x220] sm:$0xff]
  %v1456 = vld [vmem:[#allocation2 + $0x228] sm:$0xff]
  %v1457 = vld [vmem:[#allocation2 + $0x230] sm:$0xff]
  %v1458 = vld [vmem:[#allocation2 + $0x238] sm:$0xff]
  %v1459 = vld [vmem:[#allocation2 + $0x240] sm:$0xff]
  %v1460 = vld [vmem:[#allocation2 + $0x248] sm:$0xff]
  %v1461 = vld [vmem:[#allocation2 + $0x250] sm:$0xff]
  %v1462 = vld [vmem:[%s4] sm:$0xff]
  %v1463 = vld [vmem:[%s4 + $0x8] sm:$0xff]
  %v1464 = vld [vmem:[%s4 + $0x10] sm:$0xff]
  %1466 = vset.pattern.permute.xlu0 0
  %1467 = vperm.xlu0 %1466, %v1462
  %v1468 = vpop.permute.xlu0 %1467
  %1471 = vset.pattern.permute.xlu0 0
  %1472 = vperm.xlu0 %1471, %v1463
  %v1473 = vpop.permute.xlu0 %1472
  %1476 = vset.pattern.permute.xlu0 0
  %1477 = vperm.xlu0 %1476, %v1464
  %v1478 = vpop.permute.xlu0 %1477
  %v1481 = vsel %vm556, %v1376, 0
  %v1484 = vsel %vm556, %v1381, 0
  %v1487 = vsel %vm556, %v1386, 0
  %1489 = vmatprep.subr.mxu0 0.0
  %1490 = vmatpush1.msra.mxu0 %v1402
  %1491 = vmatprep.subr.mxu0 0.0
  %1492 = vmatpush1.msra.mxu0 %v1401
  %1493 = vmatprep.subr.mxu0 0.0
  %1494 = vmatpush1.msra.mxu0 %v1400
  %1495 = vmatprep.subr.mxu0 0.0
  %1496 = vmatpush1.msra.mxu0 %v1399
  %1497 = vmatprep.subr.mxu0 0.0
  %1498 = vmatpush1.msra.mxu0 %v1398
  %1499 = vmatprep.subr.mxu0 0.0
  %1500 = vmatpush1.msra.mxu0 %v1397
  %1501 = vmatprep.subr.mxu0 0.0
  %1502 = vmatpush1.msra.mxu0 %v1396
  %1503 = vmatprep.subr.mxu0 0.0
  %1504 = vmatpush1.msra.mxu0 %v1395
  %1505 = vmatprep.subr.mxu0 0.0
  %1506 = vmatpush1.msra.mxu0 %v1394
  %1507 = vmatprep.subr.mxu0 0.0
  %1508 = vmatpush1.msra.mxu0 %v1393
  %1509 = vmatprep.subr.mxu0 0.0
  %1510 = vmatpush1.msra.mxu0 %v1392
  %1511 = vmatprep.subr.mxu0 0.0
  %1512 = vmatpush1.msra.mxu0 %v1391
  %1513 = vmatprep.subr.mxu0 0.0
  %1514 = vmatpush1.msra.mxu0 %v1390
  %1515 = vmatprep.subr.mxu0 0.0
  %1516 = vmatpush1.msra.mxu0 %v1389
  %1517 = vmatprep.subr.mxu0 0.0
  %1518 = vmatpush1.msra.mxu0 %v1388
  %1519 = vmatprep.subr.mxu0 0.0
  %1520 = vmatpush1.msra.mxu0 %v1387
  %1521 = vmatprep.subr.mxu0 0.0
  %1522 = vmatpush2.msra.mxu0 %v1418
  %1523 = vmatprep.subr.mxu0 0.0
  %1524 = vmatpush2.msra.mxu0 %v1417
  %1525 = vmatprep.subr.mxu0 0.0
  %1526 = vmatpush2.msra.mxu0 %v1416
  %1527 = vmatprep.subr.mxu0 0.0
  %1528 = vmatpush2.msra.mxu0 %v1415
  %1529 = vmatprep.subr.mxu0 0.0
  %1530 = vmatpush2.msra.mxu0 %v1414
  %1531 = vmatprep.subr.mxu0 0.0
  %1532 = vmatpush2.msra.mxu0 %v1413
  %1533 = vmatprep.subr.mxu0 0.0
  %1534 = vmatpush2.msra.mxu0 %v1412
  %1535 = vmatprep.subr.mxu0 0.0
  %1536 = vmatpush2.msra.mxu0 %v1411
  %1537 = vmatprep.subr.mxu0 0.0
  %1538 = vmatpush2.msra.mxu0 %v1410
  %1539 = vmatprep.subr.mxu0 0.0
  %1540 = vmatpush2.msra.mxu0 %v1409
  %1541 = vmatprep.subr.mxu0 0.0
  %1542 = vmatpush2.msra.mxu0 %v1408
  %1543 = vmatprep.subr.mxu0 0.0
  %1544 = vmatpush2.msra.mxu0 %v1407
  %1545 = vmatprep.subr.mxu0 0.0
  %1546 = vmatpush2.msra.mxu0 %v1406
  %1547 = vmatprep.subr.mxu0 0.0
  %1548 = vmatpush2.msra.mxu0 %v1405
  %1549 = vmatprep.subr.mxu0 0.0
  %1550 = vmatpush2.msra.mxu0 %v1404
  %1551 = vmatprep.subr.mxu0 0.0
  %1552 = vmatpush2.msra.mxu0 %v1403
  %1553 = vmatprep.mubr.f32.mxu0 %v1373
  %1554 = vmatmul.mubr.f32.gmra.mxu0 %v1372
  %v1555 = vpop.f32.mrf.mxu0
  %v1556 = vadd.f32 %v1468, %v1555
  %v1557 = vpop.f32.mrf.mxu0
  %1558 = vmatprep.mubr.f32.mxu0 %v1378
  %1559 = vmatmul.mubr.f32.gmra.mxu0 %v1377
  %v1560 = vpop.f32.mrf.mxu0
  %v1561 = vadd.f32 %v1473, %v1560
  %v1562 = vpop.f32.mrf.mxu0
  %1563 = vmatprep.mubr.f32.mxu0 %v1383
  %1564 = vmatmul.mubr.f32.gmra.mxu0 %v1382
  %v1565 = vpop.f32.mrf.mxu0
  %v1566 = vadd.f32 %v1478, %v1565
  %v1567 = vpop.f32.mrf.mxu0
  %1568 = vdwg.mxu0
  %1569 = vmatprep.subr.mxu0 0.0
  %1570 = vmatpush1.msra.mxu0 %v1434
  %1571 = vmatprep.subr.mxu0 0.0
  %1572 = vmatpush1.msra.mxu0 %v1433
  %1573 = vmatprep.subr.mxu0 0.0
  %1574 = vmatpush1.msra.mxu0 %v1432
  %1575 = vmatprep.subr.mxu0 0.0
  %1576 = vmatpush1.msra.mxu0 %v1431
  %1577 = vmatprep.subr.mxu0 0.0
  %1578 = vmatpush1.msra.mxu0 %v1430
  %1579 = vmatprep.subr.mxu0 0.0
  %1580 = vmatpush1.msra.mxu0 %v1429
  %1581 = vmatprep.subr.mxu0 0.0
  %1582 = vmatpush1.msra.mxu0 %v1428
  %1583 = vmatprep.subr.mxu0 0.0
  %1584 = vmatpush1.msra.mxu0 %v1427
  %1585 = vmatprep.subr.mxu0 0.0
  %1586 = vmatpush1.msra.mxu0 %v1426
  %1587 = vmatprep.subr.mxu0 0.0
  %1588 = vmatpush1.msra.mxu0 %v1425
  %1589 = vmatprep.subr.mxu0 0.0
  %1590 = vmatpush1.msra.mxu0 %v1424
  %1591 = vmatprep.subr.mxu0 0.0
  %1592 = vmatpush1.msra.mxu0 %v1423
  %1593 = vmatprep.subr.mxu0 0.0
  %1594 = vmatpush1.msra.mxu0 %v1422
  %1595 = vmatprep.subr.mxu0 0.0
  %1596 = vmatpush1.msra.mxu0 %v1421
  %1597 = vmatprep.subr.mxu0 0.0
  %1598 = vmatpush1.msra.mxu0 %v1420
  %1599 = vmatprep.subr.mxu0 0.0
  %1600 = vmatpush1.msra.mxu0 %v1419
  %1601 = vmatprep.subr.mxu0 0.0
  %1602 = vmatpush2.msra.mxu0 %v1450
  %1603 = vmatprep.subr.mxu0 0.0
  %1604 = vmatpush2.msra.mxu0 %v1449
  %1605 = vmatprep.subr.mxu0 0.0
  %1606 = vmatpush2.msra.mxu0 %v1448
  %1607 = vmatprep.subr.mxu0 0.0
  %1608 = vmatpush2.msra.mxu0 %v1447
  %1609 = vmatprep.subr.mxu0 0.0
  %1610 = vmatpush2.msra.mxu0 %v1446
  %1611 = vmatprep.subr.mxu0 0.0
  %1612 = vmatpush2.msra.mxu0 %v1445
  %1613 = vmatprep.subr.mxu0 0.0
  %1614 = vmatpush2.msra.mxu0 %v1444
  %1615 = vmatprep.subr.mxu0 0.0
  %1616 = vmatpush2.msra.mxu0 %v1443
  %1617 = vmatprep.subr.mxu0 0.0
  %1618 = vmatpush2.msra.mxu0 %v1442
  %1619 = vmatprep.subr.mxu0 0.0
  %1620 = vmatpush2.msra.mxu0 %v1441
  %1621 = vmatprep.subr.mxu0 0.0
  %1622 = vmatpush2.msra.mxu0 %v1440
  %1623 = vmatprep.subr.mxu0 0.0
  %1624 = vmatpush2.msra.mxu0 %v1439
  %1625 = vmatprep.subr.mxu0 0.0
  %1626 = vmatpush2.msra.mxu0 %v1438
  %1627 = vmatprep.subr.mxu0 0.0
  %1628 = vmatpush2.msra.mxu0 %v1437
  %1629 = vmatprep.subr.mxu0 0.0
  %1630 = vmatpush2.msra.mxu0 %v1436
  %1631 = vmatprep.subr.mxu0 0.0
  %1632 = vmatpush2.msra.mxu0 %v1435
  %1633 = vmatprep.mubr.f32.mxu0 %v1375
  %1634 = vmatmul.mubr.f32.gmra.mxu0 %v1374
  %v1635 = vpop.f32.mrf.mxu0
  %v1636 = vadd.f32 %v1556, %v1635
  %v1637 = vpop.f32.mrf.mxu0
  %1638 = vmatprep.mubr.f32.mxu0 %v1380
  %1639 = vmatmul.mubr.f32.gmra.mxu0 %v1379
  %v1640 = vpop.f32.mrf.mxu0
  %v1641 = vadd.f32 %v1561, %v1640
  %v1642 = vpop.f32.mrf.mxu0
  %1643 = vmatprep.mubr.f32.mxu0 %v1385
  %1644 = vmatmul.mubr.f32.gmra.mxu0 %v1384
  %v1645 = vpop.f32.mrf.mxu0
  %v1646 = vadd.f32 %v1566, %v1645
  %v1647 = vpop.f32.mrf.mxu0
  %1648 = vdwg.mxu0
  %1649 = vmatprep.subr.mxu0 0.0
  %1650 = vmatpush1.msra.mxu0 0.0
  %1651 = vmatprep.subr.mxu0 0.0
  %1652 = vmatpush1.msra.mxu0 0.0
  %1653 = vmatprep.subr.mxu0 0.0
  %1654 = vmatpush1.msra.mxu0 0.0
  %1655 = vmatprep.subr.mxu0 0.0
  %1656 = vmatpush1.msra.mxu0 0.0
  %1657 = vmatprep.subr.mxu0 0.0
  %1658 = vmatpush1.msra.mxu0 0.0
  %1659 = vmatprep.subr.mxu0 0.0
  %1660 = vmatpush1.msra.mxu0 %v1461
  %1661 = vmatprep.subr.mxu0 0.0
  %1662 = vmatpush1.msra.mxu0 %v1460
  %1663 = vmatprep.subr.mxu0 0.0
  %1664 = vmatpush1.msra.mxu0 %v1459
  %1665 = vmatprep.subr.mxu0 0.0
  %1666 = vmatpush1.msra.mxu0 %v1458
  %1667 = vmatprep.subr.mxu0 0.0
  %1668 = vmatpush1.msra.mxu0 %v1457
  %1669 = vmatprep.subr.mxu0 0.0
  %1670 = vmatpush1.msra.mxu0 %v1456
  %1671 = vmatprep.subr.mxu0 0.0
  %1672 = vmatpush1.msra.mxu0 %v1455
  %1673 = vmatprep.subr.mxu0 0.0
  %1674 = vmatpush1.msra.mxu0 %v1454
  %1675 = vmatprep.subr.mxu0 0.0
  %1676 = vmatpush1.msra.mxu0 %v1453
  %1677 = vmatprep.subr.mxu0 0.0
  %1678 = vmatpush1.msra.mxu0 %v1452
  %1679 = vmatprep.subr.mxu0 0.0
  %1680 = vmatpush1.msra.mxu0 %v1451
  %1681 = vmatprep.subr.mxu0 0.0
  %1682 = vmatpush2.msra.mxu0 0.0
  %1683 = vmatprep.subr.mxu0 0.0
  %1684 = vmatpush2.msra.mxu0 0.0
  %1685 = vmatprep.subr.mxu0 0.0
  %1686 = vmatpush2.msra.mxu0 0.0
  %1687 = vmatprep.subr.mxu0 0.0
  %1688 = vmatpush2.msra.mxu0 0.0
  %1689 = vmatprep.subr.mxu0 0.0
  %1690 = vmatpush2.msra.mxu0 0.0
  %1691 = vmatprep.subr.mxu0 0.0
  %1692 = vmatpush2.msra.mxu0 0.0
  %1693 = vmatprep.subr.mxu0 0.0
  %1694 = vmatpush2.msra.mxu0 0.0
  %1695 = vmatprep.subr.mxu0 0.0
  %1696 = vmatpush2.msra.mxu0 0.0
  %1697 = vmatprep.subr.mxu0 0.0
  %1698 = vmatpush2.msra.mxu0 0.0
  %1699 = vmatprep.subr.mxu0 0.0
  %1700 = vmatpush2.msra.mxu0 0.0
  %1701 = vmatprep.subr.mxu0 0.0
  %1702 = vmatpush2.msra.mxu0 0.0
  %1703 = vmatprep.subr.mxu0 0.0
  %1704 = vmatpush2.msra.mxu0 0.0
  %1705 = vmatprep.subr.mxu0 0.0
  %1706 = vmatpush2.msra.mxu0 0.0
  %1707 = vmatprep.subr.mxu0 0.0
  %1708 = vmatpush2.msra.mxu0 0.0
  %1709 = vmatprep.subr.mxu0 0.0
  %1710 = vmatpush2.msra.mxu0 0.0
  %1711 = vmatprep.subr.mxu0 0.0
  %1712 = vmatpush2.msra.mxu0 0.0
  %1713 = vmatprep.mubr.f32.mxu0 0.0
  %1714 = vmatmul.mubr.f32.gmra.mxu0 %v1481
  %v1715 = vpop.f32.mrf.mxu0
  %v1716 = vadd.f32 %v1636, %v1715
  %v1717 = vpop.f32.mrf.mxu0
  %1718 = vmatprep.mubr.f32.mxu0 0.0
  %1719 = vmatmul.mubr.f32.gmra.mxu0 %v1484
  %v1720 = vpop.f32.mrf.mxu0
  %v1721 = vadd.f32 %v1641, %v1720
  %v1722 = vpop.f32.mrf.mxu0
  %1723 = vmatprep.mubr.f32.mxu0 0.0
  %1724 = vmatmul.mubr.f32.gmra.mxu0 %v1487
  %v1725 = vpop.f32.mrf.mxu0
  %v1726 = vadd.f32 %v1646, %v1725
  %v1727 = vpop.f32.mrf.mxu0
  %1728 = vdwg.mxu0
  %v1729 = vmax.f32 %v1716, 0.0
  %v1730 = vmax.f32 %v1721, 0.0
  %v1731 = vmax.f32 %v1726, 0.0
  %1732 = vst [vmem:[%s5] sm:$0xff] %v1729
  %1733 = vst [vmem:[%s5 + $0x8] sm:$0xff] %v1730
  %1734 = vst [vmem:[%s5 + $0x10] sm:$0xff] %v1731
  // Predicated region
  $region22: #{model_forward.1} parent=0 // pred_check
    _
  $region23: #{model_forward.1} parent=0 // pred_check_branch
    %1736 = sbr.rel (0) target = $region25
  $region24: #{model_forward.1} parent=0 // pred_region
    _
  $region25: #{model_forward.1} parent=0 // pred_fallthru
    _
  // Predicated region
  $region26: #{model_forward.1} parent=0 // pred_check
    _
  $region27: #{model_forward.1} parent=0 // pred_check_branch
    %1738 = sbr.rel (0) target = $region29
  $region28: #{model_forward.1} parent=0 // pred_region
    _
  $region29: #{model_forward.1} parent=0 // pred_fallthru
    _

</llo_original>
